<compile_context>
chip_gen: v6e
topology: v6e:2x2x1
jax: 0.10.0
libtpu: 0.0.40
codegen_flags: <defaults>
</compile_context>

<pallas_src>
import functools

import jax
import jax.numpy as jnp
from jax.experimental import pallas as pl
from jax.experimental.pallas import tpu as pltpu


def _round_up(x, m):
    return (x + m - 1) // m * m


# ------------------------------ Pallas kernel -------------------------------

def zero_conv2d_kernel(x_ref, w_ref, b_ref, o_ref, win_ref, *, h, w, cin):
    """One batch element per grid step.

    x_ref   : (h, w, cin)      bf16  raw (unpadded) NHWC image tile
    w_ref   : (9*cin, cout_p)  bf16  conv weight, taps folded into K,
                                     pre-scaled by exp(3*scale)
    b_ref   : (1, cout_p)      f32   bias * exp(3*scale)
    o_ref   : (cout_p, h*w)    f32   channels-first output block
    win_ref : (h+2, w+2, cin)  bf16  VMEM scratch: value-1-padded window
    """
    # F.pad(input, [1,1,1,1], value=1) fused into the kernel: fill the scratch
    # window with ones, overwrite the interior with the image tile.  (Refilled
    # every step so each TensorCore's scratch is always initialized.)
    win_ref[...] = jnp.ones_like(win_ref)
    win_ref[1:h + 1, 1:w + 1, :] = x_ref[...]
    win = win_ref[...]

    # Fold the 9 conv taps into the contraction dim: (h*w, 9*cin).
    taps = [win[dy:dy + h, dx:dx + w, :] for dy in range(3) for dx in range(3)]
    t = jnp.concatenate(taps, axis=-1).reshape(h * w, 9 * cin)

    # Single MXU matmul, bf16 inputs, f32 accumulation.  exp(3*scale) is
    # already folded into w_ref / b_ref, so the epilogue is one bias add.
    acc = jnp.dot(t, w_ref[...], preferred_element_type=jnp.float32)
    acc = acc + b_ref[...]

    # Emit channels-first (cout_p, h*w): lane-dense stores on h*w, no padded
    # channels written, no post-kernel transpose needed.
    o_ref[...] = acc.T.astype(o_ref.dtype)


# --------------------------------- wrapper -----------------------------------

def zero_conv2d(x_nchw, weight_oihw, bias, scale):
    """ZeroConv2d forward.

    x: (B, Cin, H, W) NCHW; weight: (Cout, Cin, 3, 3); bias: (Cout,);
    scale: (1, Cout, 1, 1).  Returns (B, Cout, H, W) float32.
    """
    bsz, cin, h, w = x_nchw.shape
    cout = weight_oihw.shape[0]
    cout_p = _round_up(cout, 8)          # sublane-align the channel dim only
    hw = h * w

    # Fold exp(3*scale) into weight and bias per output channel, in f32,
    # before the bf16 cast of the weight.
    s = jnp.exp(3.0 * scale.reshape(cout).astype(jnp.float32))
    # (Cout, Cin, 3, 3) -> (dy, dx, ci, co) -> (9*Cin, Cout); K ordering
    # (dy, dx, ci) matches the in-kernel tap concatenation order.
    w_mat = jnp.transpose(weight_oihw.astype(jnp.float32), (2, 3, 1, 0))
    w_mat = w_mat.reshape(9 * cin, cout) * s[None, :]
    w_mat = jnp.pad(w_mat, ((0, 0), (0, cout_p - cout))).astype(jnp.bfloat16)

    b_row = jnp.pad(bias.astype(jnp.float32) * s, (0, cout_p - cout))
    b_row = b_row.reshape(1, cout_p)

    # Single remaining wrapper pass over x: NCHW -> NHWC (channels on lanes)
    # fused with the bf16 cast.  No HBM pad, no window stack.
    x_nhwc = jnp.transpose(x_nchw, (0, 2, 3, 1)).astype(jnp.bfloat16)

    kern = functools.partial(zero_conv2d_kernel, h=h, w=w, cin=cin)

    out = pl.pallas_call(
        kern,
        out_shape=jax.ShapeDtypeStruct((bsz, cout_p, hw), jnp.float32),
        grid=(bsz,),
        in_specs=[
            # raw image block (leading batch dim squeezed)
            pl.BlockSpec((None, h, w, cin), lambda b: (b, 0, 0, 0)),
            # weight / bias: constant block index -> VMEM resident
            pl.BlockSpec((9 * cin, cout_p), lambda b: (0, 0)),
            pl.BlockSpec((1, cout_p), lambda b: (0, 0)),
        ],
        out_specs=pl.BlockSpec((None, cout_p, hw), lambda b: (b, 0, 0)),
        scratch_shapes=[pltpu.VMEM((h + 2, w + 2, cin), jnp.bfloat16)],
        compiler_params=pltpu.CompilerParams(
            dimension_semantics=("parallel",),
        ),
    )(x_nhwc, w_mat, b_row)

    if cout_p != cout:
        out = out[:, :cout, :]
    return out.reshape(bsz, cout, h, w)   # already channels-first


# ----------------------------- pure-JAX reference ----------------------------

def zero_conv2d_ref(x_nchw, weight_oihw, bias, scale):
    xpad = jnp.pad(x_nchw, ((0, 0), (0, 0), (1, 1), (1, 1)),
                   constant_values=1.0)
    out = jax.lax.conv_general_dilated(
        xpad, weight_oihw, window_strides=(1, 1), padding="VALID",
        dimension_numbers=("NCHW", "OIHW", "NCHW"),
        precision=jax.lax.Precision.HIGHEST)
    out = out + bias[None, :, None, None]
    out = out * jnp.exp(3.0 * scale)
    return out


# ------------------------------------ main ------------------------------------

if __name__ == "__main__":
    B, Cin, H, W = 2, 64, 16, 16
    Cout = 16

    key = jax.random.PRNGKey(0)
    kx, kw, kb, ks = jax.random.split(key, 4)
    x = jax.random.normal(kx, (B, Cin, H, W), jnp.float32)

    fwd = jax.jit(zero_conv2d)

    # 1) Module default init (zero weight / bias / scale): output must be zero.
    w0 = jnp.zeros((Cout, Cin, 3, 3), jnp.float32)
    b0 = jnp.zeros((Cout,), jnp.float32)
    s0 = jnp.zeros((1, Cout, 1, 1), jnp.float32)
    out0 = jax.block_until_ready(fwd(x, w0, b0, s0))
    assert out0.shape == (B, Cout, H, W), out0.shape
    assert bool(jnp.all(out0 == 0.0))

    # 2) "Trained" parameters: compare against the f32 lax.conv reference.
    w1 = 0.02 * jax.random.normal(kw, (Cout, Cin, 3, 3), jnp.float32)
    b1 = 0.1 * jax.random.normal(kb, (Cout,), jnp.float32)
    s1 = 0.1 * jax.random.normal(ks, (1, Cout, 1, 1), jnp.float32)

    out1 = jax.block_until_ready(fwd(x, w1, b1, s1))
    ref1 = jax.block_until_ready(jax.jit(zero_conv2d_ref)(x, w1, b1, s1))
    max_err = float(jnp.max(jnp.abs(out1 - ref1)))
    # bf16 MXU inputs with f32 accumulation -> small quantization error vs f32.
    assert jnp.allclose(out1, ref1, rtol=5e-2, atol=5e-2), max_err

    print("KERNEL_OK")
</pallas_src>

<mosaic_0001>
module attributes {stable_mosaic.version = 11 : i64} {
  func.func @zero_conv2d_kernel(%arg0: i32, %arg1: memref<1x16x16x64xbf16, #tpu.memory_space<vmem>>, %arg2: memref<576x16xbf16, #tpu.memory_space<vmem>>, %arg3: memref<1x16xf32, #tpu.memory_space<vmem>>, %arg4: memref<1x16x256xf32, #tpu.memory_space<vmem>>, %arg5: memref<18x18x64xbf16, #tpu.memory_space<vmem>>) attributes {dimension_semantics = [#tpu.dimension_semantics<parallel>], iteration_bounds = array<i64: 2>, scalar_prefetch = 0 : i64, scratch_operands = 1 : i64, tpu.core_type = #tpu.core_type<tc>, window_params = [{transform_indices = @transform_0, window_bounds = array<i64: 1, 16, 16, 64>}, {pipeline_mode = #tpu.pipeline_mode<synchronous>, transform_indices = @transform_1, window_bounds = array<i64: 576, 16>}, {pipeline_mode = #tpu.pipeline_mode<synchronous>, transform_indices = @transform_2, window_bounds = array<i64: 1, 16>}, {transform_indices = @transform_3, window_bounds = array<i64: 1, 16, 256>}]} {
    %cst = arith.constant 1.000000e+00 : bf16
    %0 = vector.broadcast %cst : bf16 to vector<18x18x64xbf16>
    %c0 = arith.constant 0 : index
    %c0_0 = arith.constant 0 : index
    %c0_1 = arith.constant 0 : index
    %1 = vector.load %arg5[%c0, %c0_0, %c0_1] : memref<18x18x64xbf16, #tpu.memory_space<vmem>>, vector<18x18x64xbf16>
    tpu.vector_store %arg5[%c0, %c0_0, %c0_1], %0 {strides = array<i32>} : memref<18x18x64xbf16, #tpu.memory_space<vmem>>, vector<18x18x64xbf16>,
    %c0_2 = arith.constant 0 : index
    %c0_3 = arith.constant 0 : index
    %c0_4 = arith.constant 0 : index
    %c0_5 = arith.constant 0 : index
    %2 = vector.load %arg1[%c0_2, %c0_3, %c0_4, %c0_5] : memref<1x16x16x64xbf16, #tpu.memory_space<vmem>>, vector<1x16x16x64xbf16>
    %3 = vector.shape_cast %2 : vector<1x16x16x64xbf16> to vector<16x16x64xbf16>
    %c1 = arith.constant 1 : index
    %c1_6 = arith.constant 1 : index
    %c0_7 = arith.constant 0 : index
    %4 = vector.load %arg5[%c1, %c1_6, %c0_7] : memref<18x18x64xbf16, #tpu.memory_space<vmem>>, vector<16x16x64xbf16>
    tpu.vector_store %arg5[%c1, %c1_6, %c0_7], %3 {strides = array<i32>} : memref<18x18x64xbf16, #tpu.memory_space<vmem>>, vector<16x16x64xbf16>,
    %c0_8 = arith.constant 0 : index
    %c0_9 = arith.constant 0 : index
    %c0_10 = arith.constant 0 : index
    %5 = vector.load %arg5[%c0_8, %c0_9, %c0_10] : memref<18x18x64xbf16, #tpu.memory_space<vmem>>, vector<18x18x64xbf16>
    %6 = vector.extract_strided_slice %5 {offsets = [0, 0, 0], sizes = [16, 16, 64], strides = [1, 1, 1]} : vector<18x18x64xbf16> to vector<16x16x64xbf16>
    %7 = vector.extract_strided_slice %5 {offsets = [0, 1, 0], sizes = [16, 16, 64], strides = [1, 1, 1]} : vector<18x18x64xbf16> to vector<16x16x64xbf16>
    %8 = vector.extract_strided_slice %5 {offsets = [0, 2, 0], sizes = [16, 16, 64], strides = [1, 1, 1]} : vector<18x18x64xbf16> to vector<16x16x64xbf16>
    %9 = vector.extract_strided_slice %5 {offsets = [1, 0, 0], sizes = [16, 16, 64], strides = [1, 1, 1]} : vector<18x18x64xbf16> to vector<16x16x64xbf16>
    %10 = vector.extract_strided_slice %5 {offsets = [1, 1, 0], sizes = [16, 16, 64], strides = [1, 1, 1]} : vector<18x18x64xbf16> to vector<16x16x64xbf16>
    %11 = vector.extract_strided_slice %5 {offsets = [1, 2, 0], sizes = [16, 16, 64], strides = [1, 1, 1]} : vector<18x18x64xbf16> to vector<16x16x64xbf16>
    %12 = vector.extract_strided_slice %5 {offsets = [2, 0, 0], sizes = [16, 16, 64], strides = [1, 1, 1]} : vector<18x18x64xbf16> to vector<16x16x64xbf16>
    %13 = vector.extract_strided_slice %5 {offsets = [2, 1, 0], sizes = [16, 16, 64], strides = [1, 1, 1]} : vector<18x18x64xbf16> to vector<16x16x64xbf16>
    %14 = vector.extract_strided_slice %5 {offsets = [2, 2, 0], sizes = [16, 16, 64], strides = [1, 1, 1]} : vector<18x18x64xbf16> to vector<16x16x64xbf16>
    %15 = tpu.concatenate %6, %7, %8, %9, %10, %11, %12, %13, %14 in 2 : vector<16x16x64xbf16>, vector<16x16x64xbf16>, vector<16x16x64xbf16>, vector<16x16x64xbf16>, vector<16x16x64xbf16>, vector<16x16x64xbf16>, vector<16x16x64xbf16>, vector<16x16x64xbf16>, vector<16x16x64xbf16> -> vector<16x16x576xbf16>
    %16 = vector.shape_cast %15 : vector<16x16x576xbf16> to vector<256x576xbf16>
    %c0_11 = arith.constant 0 : index
    %c0_12 = arith.constant 0 : index
    %17 = vector.load %arg2[%c0_11, %c0_12] : memref<576x16xbf16, #tpu.memory_space<vmem>>, vector<576x16xbf16>
    %cst_13 = arith.constant dense<0.000000e+00> : vector<256x16xf32>
    %18 = tpu.matmul %16, %17, %cst_13 {dimension_numbers = #tpu.dot_dimension_numbers<[1], [0], [0], [1], [0, 0, 1, 1], [], []>} : vector<256x576xbf16>, vector<576x16xbf16>, vector<256x16xf32> -> vector<256x16xf32>
    %c0_14 = arith.constant 0 : index
    %c0_15 = arith.constant 0 : index
    %19 = vector.load %arg3[%c0_14, %c0_15] : memref<1x16xf32, #tpu.memory_space<vmem>>, vector<1x16xf32>
    %20 = vector.broadcast %19 : vector<1x16xf32> to vector<256x16xf32>
    %21 = arith.addf %18, %20 : vector<256x16xf32>
    %22 = tpu.transpose %21, [1, 0] : vector<256x16xf32> -> vector<16x256xf32>
    %c0_16 = arith.constant 0 : index
    %c0_17 = arith.constant 0 : index
    %c0_18 = arith.constant 0 : index
    %23 = vector.load %arg4[%c0_16, %c0_17, %c0_18] : memref<1x16x256xf32, #tpu.memory_space<vmem>>, vector<1x16x256xf32>
    %24 = vector.shape_cast %23 : vector<1x16x256xf32> to vector<16x256xf32>
    %25 = vector.shape_cast %22 : vector<16x256xf32> to vector<1x16x256xf32>
    tpu.vector_store %arg4[%c0_16, %c0_17, %c0_18], %25 {strides = array<i32>} : memref<1x16x256xf32, #tpu.memory_space<vmem>>, vector<1x16x256xf32>,
    return
  }
  func.func @transform_0(%arg0: i32) -> (i32, i32, i32, i32) {
    %c0_i32 = arith.constant 0 : i32
    %c0_i32_0 = arith.constant 0 : i32
    %c0_i32_1 = arith.constant 0 : i32
    %c0_i32_2 = arith.constant 0 : i32
    return %arg0, %c0_i32, %c0_i32_0, %c0_i32_1 : i32, i32, i32, i32
  }
  func.func @transform_1(%arg0: i32) -> (i32, i32) {
    %c0_i32 = arith.constant 0 : i32
    %c0_i32_0 = arith.constant 0 : i32
    %c0_i32_1 = arith.constant 0 : i32
    return %c0_i32, %c0_i32_0 : i32, i32
  }
  func.func @transform_2(%arg0: i32) -> (i32, i32) {
    %c0_i32 = arith.constant 0 : i32
    %c0_i32_0 = arith.constant 0 : i32
    %c0_i32_1 = arith.constant 0 : i32
    return %c0_i32, %c0_i32_0 : i32, i32
  }
  func.func @transform_3(%arg0: i32) -> (i32, i32, i32) {
    %c0_i32 = arith.constant 0 : i32
    %c0_i32_0 = arith.constant 0 : i32
    %c0_i32_1 = arith.constant 0 : i32
    return %arg0, %c0_i32, %c0_i32_0 : i32, i32, i32
  }
}

</mosaic_0001>

<llo_original>
// kernel: zero_conv2d.1
$region0: #{zero_conv2d.1}
  #allocation0 [shape = 'u32[]', space=smem, size = 0x4, offset = 0x4, fixed_abs, tag = 'smem constant byte address 0x4 - core index']
  #allocation1 [shape = 'u32[144,128]{1,0:T(1,128)}', space=vmem, size = 0x12000, scoped, tag = 'internal scratch']
  #allocation2 [shape = 'bf16[18,18,64]{2,1,0:T(8,128)(2,1)}', space=vmem, size = 0x1b000, scoped, tag = 'scratch operand']
  %s0 = inlined_call_operand.vmem [shape: bf16[2,16,16,64], index: 0, kind: input, shape index: {}]
  %s1 = inlined_call_operand.vmem [shape: bf16[576,16], index: 1, kind: input, shape index: {}]
  %s2 = inlined_call_operand.vmem [shape: f32[1,16], index: 2, kind: input, shape index: {}]
  %s3 = inlined_call_operand.vmem [shape: f32[2,16,256], index: 3, kind: output, shape index: {}]
  %s4 = sld [smem:[#allocation0]]
  $region45: #{zero_conv2d.1} parent=0
    _
  %s6 = ssub.s32 1, %s4
  %s7 = scalar_select 0, %s6, %s4
  loop: start=0, step=1, limit=4
  $region2: #{zero_conv2d.1} parent=0 // loop_pre_header
    _
  $region3: #{zero_conv2d.1} parent=0 // loop_header
    %s9 = sphi 0, %s13
    %p10 = scmp.ge.s32.totalorder %s9, 4
    %s19 = sphi 0, %s21
    %s22 = sphi 0, %s19
    %s23 = sphi 0, %s22
    %s39 = sphi 0, %s23
    %s43 = sphi 0, %s43
    %s45 = sphi 0, %s43
    %s46 = sphi 0, %s45
    %s60 = sphi 0, %s46
    %s64 = sphi 0, %s64
    %s66 = sphi 0, %s64
    %s67 = sphi 0, %s66
    %s81 = sphi 0, %s67
    %s87 = sphi 0, %s89
    %s90 = sphi 0, %s87
    %s91 = sphi 0, %s90
    %s107 = sphi 0, %s91
  $region4: #{zero_conv2d.1} parent=0 // loop_header_branch
    %12 = sbr.rel (%p10) target = $region8
  $region5: #{zero_conv2d.1} parent=0 // loop_body
    %s14 = ssub.s32 %s9, 1
    %s15 = ssub.s32 %s9, 2
    %s16 = sadd.s32 %s9, 1
    %s17 = ssub.s32 %s9, %s16
    %p18 = scmp.eq.s32.totalorder %s17, 0
    %s20 = sadd.s32 %s19, 1
    %s21 = scalar_select %p18, %s19, %s20
    %p24 = pneg %p18
    %p25 = scmp.eq.s32.totalorder %s9, 1
    %p26 = por %p24, %p25
    %p27 = scmp.ne.s32.totalorder %s19, %s22
    %p28 = scmp.eq.s32.totalorder %s9, 0
    %p29 = por %p27, %p28
    %p30 = scmp.ne.s32.totalorder %s19, %s22
    %p31 = scmp.eq.s32.totalorder %s14, 1
    %p32 = por %p30, %p31
    %p33 = scmp.ne.s32.totalorder %s22, %s23
    %p34 = scmp.eq.s32.totalorder %s14, 0
    %p35 = por %p33, %p34
    %p36 = scmp.ne.s32.totalorder %s22, %s23
    %p37 = scmp.eq.s32.totalorder %s15, 1
    %p38 = por %p36, %p37
    %p40 = scmp.ne.s32.totalorder %s23, %s39
    %p41 = scmp.eq.s32.totalorder %s15, 0
    %p42 = por %p40, %p41
    %s44 = sadd.s32 %s43, 1
    %p47 = scmp.eq.s32.totalorder %s9, 1
    %p48 = scmp.ne.s32.totalorder %s43, %s45
    %p49 = scmp.eq.s32.totalorder %s9, 0
    %p50 = por %p48, %p49
    %p51 = scmp.ne.s32.totalorder %s43, %s45
    %p52 = scmp.eq.s32.totalorder %s14, 1
    %p53 = por %p51, %p52
    %p54 = scmp.ne.s32.totalorder %s45, %s46
    %p55 = scmp.eq.s32.totalorder %s14, 0
    %p56 = por %p54, %p55
    %p57 = scmp.ne.s32.totalorder %s45, %s46
    %p58 = scmp.eq.s32.totalorder %s15, 1
    %p59 = por %p57, %p58
    %p61 = scmp.ne.s32.totalorder %s46, %s60
    %p62 = scmp.eq.s32.totalorder %s15, 0
    %p63 = por %p61, %p62
    %s65 = sadd.s32 %s64, 1
    %p68 = scmp.eq.s32.totalorder %s9, 1
    %p69 = scmp.ne.s32.totalorder %s64, %s66
    %p70 = scmp.eq.s32.totalorder %s9, 0
    %p71 = por %p69, %p70
    %p72 = scmp.ne.s32.totalorder %s64, %s66
    %p73 = scmp.eq.s32.totalorder %s14, 1
    %p74 = por %p72, %p73
    %p75 = scmp.ne.s32.totalorder %s66, %s67
    %p76 = scmp.eq.s32.totalorder %s14, 0
    %p77 = por %p75, %p76
    %p78 = scmp.ne.s32.totalorder %s66, %s67
    %p79 = scmp.eq.s32.totalorder %s15, 1
    %p80 = por %p78, %p79
    %p82 = scmp.ne.s32.totalorder %s67, %s81
    %p83 = scmp.eq.s32.totalorder %s15, 0
    %p84 = por %p82, %p83
    %s85 = ssub.s32 %s9, %s16
    %p86 = scmp.eq.s32.totalorder %s85, 0
    %s88 = sadd.s32 %s87, 1
    %s89 = scalar_select %p86, %s87, %s88
    %p92 = pneg %p86
    %p93 = scmp.eq.s32.totalorder %s9, 1
    %p94 = por %p92, %p93
    %p95 = scmp.ne.s32.totalorder %s87, %s90
    %p96 = scmp.eq.s32.totalorder %s9, 0
    %p97 = por %p95, %p96
    %p98 = scmp.ne.s32.totalorder %s87, %s90
    %p99 = scmp.eq.s32.totalorder %s14, 1
    %p100 = por %p98, %p99
    %p101 = scmp.ne.s32.totalorder %s90, %s91
    %p102 = scmp.eq.s32.totalorder %s14, 0
    %p103 = por %p101, %p102
    %p104 = scmp.ne.s32.totalorder %s90, %s91
    %p105 = scmp.eq.s32.totalorder %s15, 1
    %p106 = por %p104, %p105
    %p108 = scmp.ne.s32.totalorder %s91, %s107
    %p109 = scmp.eq.s32.totalorder %s15, 0
    %p110 = por %p108, %p109
    %p111 = scmp.le.s32.totalorder 1, %s9
    %p112 = scmp.lt.s32.totalorder %s9, 3
    %p113 = pnand %p111, %p112
    %p114 = pneg %p113
    // Predicated region
    $region9: #{zero_conv2d.1} parent=5 // pred_check
      _
    $region10: #{zero_conv2d.1} parent=5 // pred_check_branch
      %116 = sbr.rel (%p113) target = $region12
    $region11: #{zero_conv2d.1} parent=5 // pred_region
      %s117 = ssub.s32 %s9, 1
      // Predicated region
      $region13: #{zero_conv2d.1} parent=11 // pred_check
        %p118 = pneg %p56
      $region14: #{zero_conv2d.1} parent=11 // pred_check_branch
        %120 = sbr.rel (%p118) target = $region16
      $region15: #{zero_conv2d.1} parent=11 // pred_region
        _
      $region16: #{zero_conv2d.1} parent=11 // pred_fallthru
        _
      // Predicated region
      $region17: #{zero_conv2d.1} parent=11 // pred_check
        %p121 = pneg %p77
      $region18: #{zero_conv2d.1} parent=11 // pred_check_branch
        %123 = sbr.rel (%p121) target = $region20
      $region19: #{zero_conv2d.1} parent=11 // pred_region
        _
      $region20: #{zero_conv2d.1} parent=11 // pred_fallthru
        _
    $region12: #{zero_conv2d.1} parent=5 // pred_fallthru
      _
    %p124 = scmp.lt.s32.totalorder %s9, 2
    // Predicated region
    $region21: #{zero_conv2d.1} parent=5 // pred_check
      %p125 = pneg %p124
    $region22: #{zero_conv2d.1} parent=5 // pred_check_branch
      %127 = sbr.rel (%p125) target = $region24
    $region23: #{zero_conv2d.1} parent=5 // pred_region
      // Predicated region
      $region25: #{zero_conv2d.1} parent=23 // pred_check
        %p128 = pneg %p29
      $region26: #{zero_conv2d.1} parent=23 // pred_check_branch
        %130 = sbr.rel (%p128) target = $region28
      $region27: #{zero_conv2d.1} parent=23 // pred_region
        %p131 = scmp.lt.s32.totalorder %s9, 1
        %s132 = scalar_select %p131, %s9, 1
        %s133 = smul.addr %s132, 32
        %s134 = smul.addr %s133, 4
        %s135 = scalar_lea.vmem %s0, %s134
      $region28: #{zero_conv2d.1} parent=23 // pred_fallthru
        _
    $region24: #{zero_conv2d.1} parent=5 // pred_fallthru
      _
    %p136 = scmp.le.s32.totalorder 1, %s9
    %p137 = scmp.lt.s32.totalorder %s9, 3
    %p138 = pnand %p136, %p137
    %p139 = pneg %p138
    // Predicated region
    $region29: #{zero_conv2d.1} parent=5 // pred_check
      _
    $region30: #{zero_conv2d.1} parent=5 // pred_check_branch
      %141 = sbr.rel (%p138) target = $region32
    $region31: #{zero_conv2d.1} parent=5 // pred_region
      %s142 = ssub.s32 %s9, 1
      %p143 = scmp.lt.s32.totalorder %s14, 1
      %s144 = scalar_select %p143, %s14, 1
      %s145 = smul.addr %s144, 32
      %s146 = smul.addr %s145, 4
      %s147 = scalar_lea.vmem %s0, %s146
      %p148 = pneg %p35
      %p149 = pneg %p32
      %p150 = pneg %p56
      %p151 = pneg %p53
      %p152 = pneg %p77
      %p153 = pneg %p74
      %p154 = pneg %p103
      %p155 = pneg %p100
      %p156 = scmp.lt.s32.totalorder %s14, 1
      %s157 = scalar_select %p156, %s14, 1
      %s158 = smul.addr %s157, 4
      %s159 = smul.addr %s158, 8
      %s160 = scalar_lea.vmem %s3, %s159
      %p161 = scmp.lt.s32.totalorder %s14, 1
      %s162 = scalar_select %p161, %s14, 1
      %s163 = smul.addr %s162, 32
      %s164 = smul.addr %s163, 4
      %s165 = scalar_lea.vmem %s0, %s164
      %p166 = scmp.lt.s32.totalorder %s14, 1
      %s167 = scalar_select %p166, %s14, 1
      %s168 = smul.addr %s167, 4
      %s169 = smul.addr %s168, 8
      %s170 = scalar_lea.vmem %s3, %s169
      %vm173 = vcmask 519168
      %174 = vst.msk [vmem:[#allocation2] sm:$0xf] %vm173, 1065369472
      %175 = vst.msk [vmem:[#allocation2 + $0x4] sm:$0xf] %vm173, 1065369472
      %vm176 = vcmask 516096
      %177 = vst.msk [vmem:[#allocation2 + $0x8] sm:$0x1] %vm176, 1065369472
      %178 = vst.msk [vmem:[#allocation2 + $0xc] sm:$0xf] %vm173, 1065369472
      %179 = vst.msk [vmem:[#allocation2 + $0x10] sm:$0xf] %vm173, 1065369472
      %180 = vst.msk [vmem:[#allocation2 + $0x14] sm:$0x1] %vm176, 1065369472
      %181 = vst.msk [vmem:[#allocation2 + $0x18] sm:$0xf] %vm173, 1065369472
      %182 = vst.msk [vmem:[#allocation2 + $0x1c] sm:$0xf] %vm173, 1065369472
      %183 = vst.msk [vmem:[#allocation2 + $0x20] sm:$0x1] %vm176, 1065369472
      %184 = vst.msk [vmem:[#allocation2 + $0x24] sm:$0xf] %vm173, 1065369472
      %185 = vst.msk [vmem:[#allocation2 + $0x28] sm:$0xf] %vm173, 1065369472
      %186 = vst.msk [vmem:[#allocation2 + $0x2c] sm:$0x1] %vm176, 1065369472
      %187 = vst.msk [vmem:[#allocation2 + $0x30] sm:$0xf] %vm173, 1065369472
      %188 = vst.msk [vmem:[#allocation2 + $0x34] sm:$0xf] %vm173, 1065369472
      %189 = vst.msk [vmem:[#allocation2 + $0x38] sm:$0x1] %vm176, 1065369472
      %190 = vst.msk [vmem:[#allocation2 + $0x3c] sm:$0xf] %vm173, 1065369472
      %191 = vst.msk [vmem:[#allocation2 + $0x40] sm:$0xf] %vm173, 1065369472
      %192 = vst.msk [vmem:[#allocation2 + $0x44] sm:$0x1] %vm176, 1065369472
      %193 = vst.msk [vmem:[#allocation2 + $0x48] sm:$0xf] %vm173, 1065369472
      %194 = vst.msk [vmem:[#allocation2 + $0x4c] sm:$0xf] %vm173, 1065369472
      %195 = vst.msk [vmem:[#allocation2 + $0x50] sm:$0x1] %vm176, 1065369472
      %196 = vst.msk [vmem:[#allocation2 + $0x54] sm:$0xf] %vm173, 1065369472
      %197 = vst.msk [vmem:[#allocation2 + $0x58] sm:$0xf] %vm173, 1065369472
      %198 = vst.msk [vmem:[#allocation2 + $0x5c] sm:$0x1] %vm176, 1065369472
      %199 = vst.msk [vmem:[#allocation2 + $0x60] sm:$0xf] %vm173, 1065369472
      %200 = vst.msk [vmem:[#allocation2 + $0x64] sm:$0xf] %vm173, 1065369472
      %201 = vst.msk [vmem:[#allocation2 + $0x68] sm:$0x1] %vm176, 1065369472
      %202 = vst.msk [vmem:[#allocation2 + $0x6c] sm:$0xf] %vm173, 1065369472
      %203 = vst.msk [vmem:[#allocation2 + $0x70] sm:$0xf] %vm173, 1065369472
      %204 = vst.msk [vmem:[#allocation2 + $0x74] sm:$0x1] %vm176, 1065369472
      %205 = vst.msk [vmem:[#allocation2 + $0x78] sm:$0xf] %vm173, 1065369472
      %206 = vst.msk [vmem:[#allocation2 + $0x7c] sm:$0xf] %vm173, 1065369472
      %207 = vst.msk [vmem:[#allocation2 + $0x80] sm:$0x1] %vm176, 1065369472
      %208 = vst.msk [vmem:[#allocation2 + $0x84] sm:$0xf] %vm173, 1065369472
      %209 = vst.msk [vmem:[#allocation2 + $0x88] sm:$0xf] %vm173, 1065369472
      %210 = vst.msk [vmem:[#allocation2 + $0x8c] sm:$0x1] %vm176, 1065369472
      %211 = vst.msk [vmem:[#allocation2 + $0x90] sm:$0xf] %vm173, 1065369472
      %212 = vst.msk [vmem:[#allocation2 + $0x94] sm:$0xf] %vm173, 1065369472
      %213 = vst.msk [vmem:[#allocation2 + $0x98] sm:$0x1] %vm176, 1065369472
      %214 = vst.msk [vmem:[#allocation2 + $0x9c] sm:$0xf] %vm173, 1065369472
      %215 = vst.msk [vmem:[#allocation2 + $0xa0] sm:$0xf] %vm173, 1065369472
      %216 = vst.msk [vmem:[#allocation2 + $0xa4] sm:$0x1] %vm176, 1065369472
      %217 = vst.msk [vmem:[#allocation2 + $0xa8] sm:$0xf] %vm173, 1065369472
      %218 = vst.msk [vmem:[#allocation2 + $0xac] sm:$0xf] %vm173, 1065369472
      %219 = vst.msk [vmem:[#allocation2 + $0xb0] sm:$0x1] %vm176, 1065369472
      %220 = vst.msk [vmem:[#allocation2 + $0xb4] sm:$0xf] %vm173, 1065369472
      %221 = vst.msk [vmem:[#allocation2 + $0xb8] sm:$0xf] %vm173, 1065369472
      %222 = vst.msk [vmem:[#allocation2 + $0xbc] sm:$0x1] %vm176, 1065369472
      %223 = vst.msk [vmem:[#allocation2 + $0xc0] sm:$0xf] %vm173, 1065369472
      %224 = vst.msk [vmem:[#allocation2 + $0xc4] sm:$0xf] %vm173, 1065369472
      %225 = vst.msk [vmem:[#allocation2 + $0xc8] sm:$0x1] %vm176, 1065369472
      %226 = vst.msk [vmem:[#allocation2 + $0xcc] sm:$0xf] %vm173, 1065369472
      %227 = vst.msk [vmem:[#allocation2 + $0xd0] sm:$0xf] %vm173, 1065369472
      %228 = vst.msk [vmem:[#allocation2 + $0xd4] sm:$0x1] %vm176, 1065369472
      %v229 = vld [vmem:[%s165] sm:$0xf]
      %v230 = vld [vmem:[%s165 + $0x4] sm:$0xf]
      %v231 = vld [vmem:[%s165 + $0x8] sm:$0xf]
      %v232 = vld [vmem:[%s165 + $0xc] sm:$0xf]
      %v233 = vld [vmem:[%s165 + $0x10] sm:$0xf]
      %v234 = vld [vmem:[%s165 + $0x14] sm:$0xf]
      %v235 = vld [vmem:[%s165 + $0x18] sm:$0xf]
      %v236 = vld [vmem:[%s165 + $0x1c] sm:$0xf]
      %v237 = vld [vmem:[%s165 + $0x20] sm:$0xf]
      %v238 = vld [vmem:[%s165 + $0x24] sm:$0xf]
      %v239 = vld [vmem:[%s165 + $0x28] sm:$0xf]
      %v240 = vld [vmem:[%s165 + $0x2c] sm:$0xf]
      %v241 = vld [vmem:[%s165 + $0x30] sm:$0xf]
      %v242 = vld [vmem:[%s165 + $0x34] sm:$0xf]
      %v243 = vld [vmem:[%s165 + $0x38] sm:$0xf]
      %v244 = vld [vmem:[%s165 + $0x3c] sm:$0xf]
      %v245 = vld [vmem:[%s165 + $0x40] sm:$0xf]
      %v246 = vld [vmem:[%s165 + $0x44] sm:$0xf]
      %v247 = vld [vmem:[%s165 + $0x48] sm:$0xf]
      %v248 = vld [vmem:[%s165 + $0x4c] sm:$0xf]
      %v249 = vld [vmem:[%s165 + $0x50] sm:$0xf]
      %v250 = vld [vmem:[%s165 + $0x54] sm:$0xf]
      %v251 = vld [vmem:[%s165 + $0x58] sm:$0xf]
      %v252 = vld [vmem:[%s165 + $0x5c] sm:$0xf]
      %v253 = vld [vmem:[%s165 + $0x60] sm:$0xf]
      %v254 = vld [vmem:[%s165 + $0x64] sm:$0xf]
      %v255 = vld [vmem:[%s165 + $0x68] sm:$0xf]
      %v256 = vld [vmem:[%s165 + $0x6c] sm:$0xf]
      %v257 = vld [vmem:[%s165 + $0x70] sm:$0xf]
      %v258 = vld [vmem:[%s165 + $0x74] sm:$0xf]
      %v259 = vld [vmem:[%s165 + $0x78] sm:$0xf]
      %v260 = vld [vmem:[%s165 + $0x7c] sm:$0xf]
      %vm261 = vsmask.f32 256
      %vm262 = vsmask.f32 4368
      %vm263 = vmor %vm261, %vm262
      %v265 = vshrl.u32 %v229, 16
      %v267 = vrot.slane %v265, 7
      %v268 = vshll.u32 %v229, 16
      %v270 = vor.u32 %v267, %v268
      %v271 = vrot.slane %v267, 4
      %v273 = vshrl.u32 %v230, 16
      %v275 = vrot.slane %v273, 7
      %v276 = vshll.u32 %v230, 16
      %v278 = vor.u32 %v275, %v276
      %v279 = vsel %vm263, %v271, %v278
      %v280 = vrot.slane %v275, 4
      %v282 = vshrl.u32 %v231, 16
      %v284 = vrot.slane %v282, 7
      %v285 = vshll.u32 %v231, 16
      %v287 = vor.u32 %v284, %v285
      %v288 = vrot.slane %v284, 4
      %v290 = vshrl.u32 %v232, 16
      %v292 = vrot.slane %v290, 7
      %v293 = vshll.u32 %v232, 16
      %v295 = vor.u32 %v292, %v293
      %v296 = vsel %vm263, %v288, %v295
      %v297 = vrot.slane %v292, 4
      %v299 = vshrl.u32 %v233, 16
      %v301 = vrot.slane %v299, 7
      %v302 = vshll.u32 %v233, 16
      %v304 = vor.u32 %v301, %v302
      %v305 = vrot.slane %v301, 4
      %v307 = vshrl.u32 %v234, 16
      %v309 = vrot.slane %v307, 7
      %v310 = vshll.u32 %v234, 16
      %v312 = vor.u32 %v309, %v310
      %v313 = vsel %vm263, %v305, %v312
      %v314 = vrot.slane %v309, 4
      %v316 = vshrl.u32 %v235, 16
      %v318 = vrot.slane %v316, 7
      %v319 = vshll.u32 %v235, 16
      %v321 = vor.u32 %v318, %v319
      %v322 = vrot.slane %v318, 4
      %v324 = vshrl.u32 %v236, 16
      %v326 = vrot.slane %v324, 7
      %v327 = vshll.u32 %v236, 16
      %v329 = vor.u32 %v326, %v327
      %v330 = vsel %vm263, %v322, %v329
      %v331 = vrot.slane %v326, 4
      %v333 = vshrl.u32 %v237, 16
      %v335 = vrot.slane %v333, 7
      %v336 = vshll.u32 %v237, 16
      %v338 = vor.u32 %v335, %v336
      %v339 = vrot.slane %v335, 4
      %v341 = vshrl.u32 %v238, 16
      %v343 = vrot.slane %v341, 7
      %v344 = vshll.u32 %v238, 16
      %v346 = vor.u32 %v343, %v344
      %v347 = vsel %vm263, %v339, %v346
      %v348 = vrot.slane %v343, 4
      %v350 = vshrl.u32 %v239, 16
      %v352 = vrot.slane %v350, 7
      %v353 = vshll.u32 %v239, 16
      %v355 = vor.u32 %v352, %v353
      %v356 = vrot.slane %v352, 4
      %v358 = vshrl.u32 %v240, 16
      %v360 = vrot.slane %v358, 7
      %v361 = vshll.u32 %v240, 16
      %v363 = vor.u32 %v360, %v361
      %v364 = vsel %vm263, %v356, %v363
      %v365 = vrot.slane %v360, 4
      %v367 = vshrl.u32 %v241, 16
      %v369 = vrot.slane %v367, 7
      %v370 = vshll.u32 %v241, 16
      %v372 = vor.u32 %v369, %v370
      %v373 = vrot.slane %v369, 4
      %v375 = vshrl.u32 %v242, 16
      %v377 = vrot.slane %v375, 7
      %v378 = vshll.u32 %v242, 16
      %v380 = vor.u32 %v377, %v378
      %v381 = vsel %vm263, %v373, %v380
      %v382 = vrot.slane %v377, 4
      %v384 = vshrl.u32 %v243, 16
      %v386 = vrot.slane %v384, 7
      %v387 = vshll.u32 %v243, 16
      %v389 = vor.u32 %v386, %v387
      %v390 = vrot.slane %v386, 4
      %v392 = vshrl.u32 %v244, 16
      %v394 = vrot.slane %v392, 7
      %v395 = vshll.u32 %v244, 16
      %v397 = vor.u32 %v394, %v395
      %v398 = vsel %vm263, %v390, %v397
      %v399 = vrot.slane %v394, 4
      %v401 = vshrl.u32 %v245, 16
      %v403 = vrot.slane %v401, 7
      %v404 = vshll.u32 %v245, 16
      %v406 = vor.u32 %v403, %v404
      %v407 = vrot.slane %v403, 4
      %v409 = vshrl.u32 %v246, 16
      %v411 = vrot.slane %v409, 7
      %v412 = vshll.u32 %v246, 16
      %v414 = vor.u32 %v411, %v412
      %v415 = vsel %vm263, %v407, %v414
      %v416 = vrot.slane %v411, 4
      %v418 = vshrl.u32 %v247, 16
      %v420 = vrot.slane %v418, 7
      %v421 = vshll.u32 %v247, 16
      %v423 = vor.u32 %v420, %v421
      %v424 = vrot.slane %v420, 4
      %v426 = vshrl.u32 %v248, 16
      %v428 = vrot.slane %v426, 7
      %v429 = vshll.u32 %v248, 16
      %v431 = vor.u32 %v428, %v429
      %v432 = vsel %vm263, %v424, %v431
      %v433 = vrot.slane %v428, 4
      %v435 = vshrl.u32 %v249, 16
      %v437 = vrot.slane %v435, 7
      %v438 = vshll.u32 %v249, 16
      %v440 = vor.u32 %v437, %v438
      %v441 = vrot.slane %v437, 4
      %v443 = vshrl.u32 %v250, 16
      %v445 = vrot.slane %v443, 7
      %v446 = vshll.u32 %v250, 16
      %v448 = vor.u32 %v445, %v446
      %v449 = vsel %vm263, %v441, %v448
      %v450 = vrot.slane %v445, 4
      %v452 = vshrl.u32 %v251, 16
      %v454 = vrot.slane %v452, 7
      %v455 = vshll.u32 %v251, 16
      %v457 = vor.u32 %v454, %v455
      %v458 = vrot.slane %v454, 4
      %v460 = vshrl.u32 %v252, 16
      %v462 = vrot.slane %v460, 7
      %v463 = vshll.u32 %v252, 16
      %v465 = vor.u32 %v462, %v463
      %v466 = vsel %vm263, %v458, %v465
      %v467 = vrot.slane %v462, 4
      %v469 = vshrl.u32 %v253, 16
      %v471 = vrot.slane %v469, 7
      %v472 = vshll.u32 %v253, 16
      %v474 = vor.u32 %v471, %v472
      %v475 = vrot.slane %v471, 4
      %v477 = vshrl.u32 %v254, 16
      %v479 = vrot.slane %v477, 7
      %v480 = vshll.u32 %v254, 16
      %v482 = vor.u32 %v479, %v480
      %v483 = vsel %vm263, %v475, %v482
      %v484 = vrot.slane %v479, 4
      %v486 = vshrl.u32 %v255, 16
      %v488 = vrot.slane %v486, 7
      %v489 = vshll.u32 %v255, 16
      %v491 = vor.u32 %v488, %v489
      %v492 = vrot.slane %v488, 4
      %v494 = vshrl.u32 %v256, 16
      %v496 = vrot.slane %v494, 7
      %v497 = vshll.u32 %v256, 16
      %v499 = vor.u32 %v496, %v497
      %v500 = vsel %vm263, %v492, %v499
      %v501 = vrot.slane %v496, 4
      %v503 = vshrl.u32 %v257, 16
      %v505 = vrot.slane %v503, 7
      %v506 = vshll.u32 %v257, 16
      %v508 = vor.u32 %v505, %v506
      %v509 = vrot.slane %v505, 4
      %v511 = vshrl.u32 %v258, 16
      %v513 = vrot.slane %v511, 7
      %v514 = vshll.u32 %v258, 16
      %v516 = vor.u32 %v513, %v514
      %v517 = vsel %vm263, %v509, %v516
      %v518 = vrot.slane %v513, 4
      %v520 = vshrl.u32 %v259, 16
      %v522 = vrot.slane %v520, 7
      %v523 = vshll.u32 %v259, 16
      %v525 = vor.u32 %v522, %v523
      %v526 = vrot.slane %v522, 4
      %v528 = vshrl.u32 %v260, 16
      %v530 = vrot.slane %v528, 7
      %v531 = vshll.u32 %v260, 16
      %v533 = vor.u32 %v530, %v531
      %v534 = vsel %vm263, %v526, %v533
      %v535 = vrot.slane %v530, 4
      %s584 = scalar_lea.vmem [#allocation2], 12
      %vm585 = vcmask 519168
      %vm586 = vsmask.f32 7938
      %vm587 = vmand %vm585, %vm586
      %v588 = vld [vmem:[%s584] sm:$0xf]
      %v589 = vsel %vm587, %v270, %v588
      %590 = vst [vmem:[%s584] sm:$0xf] %v589
      %591 = vst.msk [vmem:[%s584 + $0x4] sm:$0xf] %vm173, %v279
      %vm592 = vcmask 516096
      %vm593 = vmand %vm592, %vm261
      %v594 = vld [vmem:[%s584 + $0x8] sm:$0x1]
      %v595 = vsel %vm593, %v280, %v594
      %596 = vst [vmem:[%s584 + $0x8] sm:$0x1] %v595
      %v597 = vld [vmem:[%s584 + $0xc] sm:$0xf]
      %v598 = vsel %vm587, %v287, %v597
      %599 = vst [vmem:[%s584 + $0xc] sm:$0xf] %v598
      %600 = vst.msk [vmem:[%s584 + $0x10] sm:$0xf] %vm173, %v296
      %v601 = vld [vmem:[%s584 + $0x14] sm:$0x1]
      %v602 = vsel %vm593, %v297, %v601
      %603 = vst [vmem:[%s584 + $0x14] sm:$0x1] %v602
      %v604 = vld [vmem:[%s584 + $0x18] sm:$0xf]
      %v605 = vsel %vm587, %v304, %v604
      %606 = vst [vmem:[%s584 + $0x18] sm:$0xf] %v605
      %607 = vst.msk [vmem:[%s584 + $0x1c] sm:$0xf] %vm173, %v313
      %v608 = vld [vmem:[%s584 + $0x20] sm:$0x1]
      %v609 = vsel %vm593, %v314, %v608
      %610 = vst [vmem:[%s584 + $0x20] sm:$0x1] %v609
      %v611 = vld [vmem:[%s584 + $0x24] sm:$0xf]
      %v612 = vsel %vm587, %v321, %v611
      %613 = vst [vmem:[%s584 + $0x24] sm:$0xf] %v612
      %614 = vst.msk [vmem:[%s584 + $0x28] sm:$0xf] %vm173, %v330
      %v615 = vld [vmem:[%s584 + $0x2c] sm:$0x1]
      %v616 = vsel %vm593, %v331, %v615
      %617 = vst [vmem:[%s584 + $0x2c] sm:$0x1] %v616
      %v618 = vld [vmem:[%s584 + $0x30] sm:$0xf]
      %v619 = vsel %vm587, %v338, %v618
      %620 = vst [vmem:[%s584 + $0x30] sm:$0xf] %v619
      %621 = vst.msk [vmem:[%s584 + $0x34] sm:$0xf] %vm173, %v347
      %v622 = vld [vmem:[%s584 + $0x38] sm:$0x1]
      %v623 = vsel %vm593, %v348, %v622
      %624 = vst [vmem:[%s584 + $0x38] sm:$0x1] %v623
      %v625 = vld [vmem:[%s584 + $0x3c] sm:$0xf]
      %v626 = vsel %vm587, %v355, %v625
      %627 = vst [vmem:[%s584 + $0x3c] sm:$0xf] %v626
      %628 = vst.msk [vmem:[%s584 + $0x40] sm:$0xf] %vm173, %v364
      %v629 = vld [vmem:[%s584 + $0x44] sm:$0x1]
      %v630 = vsel %vm593, %v365, %v629
      %631 = vst [vmem:[%s584 + $0x44] sm:$0x1] %v630
      %v632 = vld [vmem:[%s584 + $0x48] sm:$0xf]
      %v633 = vsel %vm587, %v372, %v632
      %634 = vst [vmem:[%s584 + $0x48] sm:$0xf] %v633
      %635 = vst.msk [vmem:[%s584 + $0x4c] sm:$0xf] %vm173, %v381
      %v636 = vld [vmem:[%s584 + $0x50] sm:$0x1]
      %v637 = vsel %vm593, %v382, %v636
      %638 = vst [vmem:[%s584 + $0x50] sm:$0x1] %v637
      %v639 = vld [vmem:[%s584 + $0x54] sm:$0xf]
      %v640 = vsel %vm587, %v389, %v639
      %641 = vst [vmem:[%s584 + $0x54] sm:$0xf] %v640
      %642 = vst.msk [vmem:[%s584 + $0x58] sm:$0xf] %vm173, %v398
      %v643 = vld [vmem:[%s584 + $0x5c] sm:$0x1]
      %v644 = vsel %vm593, %v399, %v643
      %645 = vst [vmem:[%s584 + $0x5c] sm:$0x1] %v644
      %v646 = vld [vmem:[%s584 + $0x60] sm:$0xf]
      %v647 = vsel %vm587, %v406, %v646
      %648 = vst [vmem:[%s584 + $0x60] sm:$0xf] %v647
      %649 = vst.msk [vmem:[%s584 + $0x64] sm:$0xf] %vm173, %v415
      %v650 = vld [vmem:[%s584 + $0x68] sm:$0x1]
      %v651 = vsel %vm593, %v416, %v650
      %652 = vst [vmem:[%s584 + $0x68] sm:$0x1] %v651
      %v653 = vld [vmem:[%s584 + $0x6c] sm:$0xf]
      %v654 = vsel %vm587, %v423, %v653
      %655 = vst [vmem:[%s584 + $0x6c] sm:$0xf] %v654
      %656 = vst.msk [vmem:[%s584 + $0x70] sm:$0xf] %vm173, %v432
      %v657 = vld [vmem:[%s584 + $0x74] sm:$0x1]
      %v658 = vsel %vm593, %v433, %v657
      %659 = vst [vmem:[%s584 + $0x74] sm:$0x1] %v658
      %v660 = vld [vmem:[%s584 + $0x78] sm:$0xf]
      %v661 = vsel %vm587, %v440, %v660
      %662 = vst [vmem:[%s584 + $0x78] sm:$0xf] %v661
      %663 = vst.msk [vmem:[%s584 + $0x7c] sm:$0xf] %vm173, %v449
      %v664 = vld [vmem:[%s584 + $0x80] sm:$0x1]
      %v665 = vsel %vm593, %v450, %v664
      %666 = vst [vmem:[%s584 + $0x80] sm:$0x1] %v665
      %v667 = vld [vmem:[%s584 + $0x84] sm:$0xf]
      %v668 = vsel %vm587, %v457, %v667
      %669 = vst [vmem:[%s584 + $0x84] sm:$0xf] %v668
      %670 = vst.msk [vmem:[%s584 + $0x88] sm:$0xf] %vm173, %v466
      %v671 = vld [vmem:[%s584 + $0x8c] sm:$0x1]
      %v672 = vsel %vm593, %v467, %v671
      %673 = vst [vmem:[%s584 + $0x8c] sm:$0x1] %v672
      %v674 = vld [vmem:[%s584 + $0x90] sm:$0xf]
      %v675 = vsel %vm587, %v474, %v674
      %676 = vst [vmem:[%s584 + $0x90] sm:$0xf] %v675
      %677 = vst.msk [vmem:[%s584 + $0x94] sm:$0xf] %vm173, %v483
      %v678 = vld [vmem:[%s584 + $0x98] sm:$0x1]
      %v679 = vsel %vm593, %v484, %v678
      %680 = vst [vmem:[%s584 + $0x98] sm:$0x1] %v679
      %v681 = vld [vmem:[%s584 + $0x9c] sm:$0xf]
      %v682 = vsel %vm587, %v491, %v681
      %683 = vst [vmem:[%s584 + $0x9c] sm:$0xf] %v682
      %684 = vst.msk [vmem:[%s584 + $0xa0] sm:$0xf] %vm173, %v500
      %v685 = vld [vmem:[%s584 + $0xa4] sm:$0x1]
      %v686 = vsel %vm593, %v501, %v685
      %687 = vst [vmem:[%s584 + $0xa4] sm:$0x1] %v686
      %v688 = vld [vmem:[%s584 + $0xa8] sm:$0xf]
      %v689 = vsel %vm587, %v508, %v688
      %690 = vst [vmem:[%s584 + $0xa8] sm:$0xf] %v689
      %691 = vst.msk [vmem:[%s584 + $0xac] sm:$0xf] %vm173, %v517
      %v692 = vld [vmem:[%s584 + $0xb0] sm:$0x1]
      %v693 = vsel %vm593, %v518, %v692
      %694 = vst [vmem:[%s584 + $0xb0] sm:$0x1] %v693
      %v695 = vld [vmem:[%s584 + $0xb4] sm:$0xf]
      %v696 = vsel %vm587, %v525, %v695
      %697 = vst [vmem:[%s584 + $0xb4] sm:$0xf] %v696
      %698 = vst.msk [vmem:[%s584 + $0xb8] sm:$0xf] %vm173, %v534
      %v699 = vld [vmem:[%s584 + $0xbc] sm:$0x1]
      %v700 = vsel %vm593, %v535, %v699
      %701 = vst [vmem:[%s584 + $0xbc] sm:$0x1] %v700
      %v702 = vld [vmem:[#allocation2] sm:$0xf]
      %v703 = vld [vmem:[#allocation2 + $0x4] sm:$0xf]
      %v704 = vld [vmem:[#allocation2 + $0x8] sm:$0x1]
      %v705 = vld [vmem:[#allocation2 + $0xc] sm:$0xf]
      %v706 = vld [vmem:[#allocation2 + $0x10] sm:$0xf]
      %v707 = vld [vmem:[#allocation2 + $0x14] sm:$0x1]
      %v708 = vld [vmem:[#allocation2 + $0x18] sm:$0xf]
      %v709 = vld [vmem:[#allocation2 + $0x1c] sm:$0xf]
      %v710 = vld [vmem:[#allocation2 + $0x20] sm:$0x1]
      %v711 = vld [vmem:[#allocation2 + $0x24] sm:$0xf]
      %v712 = vld [vmem:[#allocation2 + $0x28] sm:$0xf]
      %v713 = vld [vmem:[#allocation2 + $0x2c] sm:$0x1]
      %v714 = vld [vmem:[#allocation2 + $0x30] sm:$0xf]
      %v715 = vld [vmem:[#allocation2 + $0x34] sm:$0xf]
      %v716 = vld [vmem:[#allocation2 + $0x38] sm:$0x1]
      %v717 = vld [vmem:[#allocation2 + $0x3c] sm:$0xf]
      %v718 = vld [vmem:[#allocation2 + $0x40] sm:$0xf]
      %v719 = vld [vmem:[#allocation2 + $0x44] sm:$0x1]
      %v720 = vld [vmem:[#allocation2 + $0x48] sm:$0xf]
      %v721 = vld [vmem:[#allocation2 + $0x4c] sm:$0xf]
      %v722 = vld [vmem:[#allocation2 + $0x50] sm:$0x1]
      %v723 = vld [vmem:[#allocation2 + $0x54] sm:$0xf]
      %v724 = vld [vmem:[#allocation2 + $0x58] sm:$0xf]
      %v725 = vld [vmem:[#allocation2 + $0x5c] sm:$0x1]
      %v726 = vld [vmem:[#allocation2 + $0x60] sm:$0xf]
      %v727 = vld [vmem:[#allocation2 + $0x64] sm:$0xf]
      %v728 = vld [vmem:[#allocation2 + $0x68] sm:$0x1]
      %v729 = vld [vmem:[#allocation2 + $0x6c] sm:$0xf]
      %v730 = vld [vmem:[#allocation2 + $0x70] sm:$0xf]
      %v731 = vld [vmem:[#allocation2 + $0x74] sm:$0x1]
      %v732 = vld [vmem:[#allocation2 + $0x78] sm:$0xf]
      %v733 = vld [vmem:[#allocation2 + $0x7c] sm:$0xf]
      %v734 = vld [vmem:[#allocation2 + $0x80] sm:$0x1]
      %v735 = vld [vmem:[#allocation2 + $0x84] sm:$0xf]
      %v736 = vld [vmem:[#allocation2 + $0x88] sm:$0xf]
      %v737 = vld [vmem:[#allocation2 + $0x8c] sm:$0x1]
      %v738 = vld [vmem:[#allocation2 + $0x90] sm:$0xf]
      %v739 = vld [vmem:[#allocation2 + $0x94] sm:$0xf]
      %v740 = vld [vmem:[#allocation2 + $0x98] sm:$0x1]
      %v741 = vld [vmem:[#allocation2 + $0x9c] sm:$0xf]
      %v742 = vld [vmem:[#allocation2 + $0xa0] sm:$0xf]
      %v743 = vld [vmem:[#allocation2 + $0xa4] sm:$0x1]
      %v744 = vld [vmem:[#allocation2 + $0xa8] sm:$0xf]
      %v745 = vld [vmem:[#allocation2 + $0xac] sm:$0xf]
      %v746 = vld [vmem:[#allocation2 + $0xb0] sm:$0x1]
      %v747 = vld [vmem:[#allocation2 + $0xb4] sm:$0xf]
      %v748 = vld [vmem:[#allocation2 + $0xb8] sm:$0xf]
      %v749 = vld [vmem:[#allocation2 + $0xbc] sm:$0x1]
      %v750 = vld [vmem:[#allocation2 + $0xc0] sm:$0xf]
      %v751 = vld [vmem:[#allocation2 + $0xc4] sm:$0xf]
      %v752 = vld [vmem:[#allocation2 + $0xc8] sm:$0x1]
      %v753 = vld [vmem:[#allocation2 + $0xcc] sm:$0xf]
      %v754 = vld [vmem:[#allocation2 + $0xd0] sm:$0xf]
      %v755 = vld [vmem:[#allocation2 + $0xd4] sm:$0x1]
      %v788 = vunpack.c.l.b16 %v702
      %v789 = vunpack.c.l.b16 %v703
      %v790 = vunpack.c.l.b16 %v705
      %v791 = vunpack.c.l.b16 %v706
      %v792 = vunpack.c.l.b16 %v708
      %v793 = vunpack.c.l.b16 %v709
      %v794 = vunpack.c.l.b16 %v711
      %v795 = vunpack.c.l.b16 %v712
      %v796 = vunpack.c.l.b16 %v714
      %v797 = vunpack.c.l.b16 %v715
      %v798 = vunpack.c.l.b16 %v717
      %v799 = vunpack.c.l.b16 %v718
      %v800 = vunpack.c.l.b16 %v720
      %v801 = vunpack.c.l.b16 %v721
      %v802 = vunpack.c.l.b16 %v723
      %v803 = vunpack.c.l.b16 %v724
      %v804 = vunpack.c.l.b16 %v726
      %v805 = vunpack.c.l.b16 %v727
      %v806 = vunpack.c.l.b16 %v729
      %v807 = vunpack.c.l.b16 %v730
      %v808 = vunpack.c.l.b16 %v732
      %v809 = vunpack.c.l.b16 %v733
      %v810 = vunpack.c.l.b16 %v735
      %v811 = vunpack.c.l.b16 %v736
      %v812 = vunpack.c.l.b16 %v738
      %v813 = vunpack.c.l.b16 %v739
      %v814 = vunpack.c.l.b16 %v741
      %v815 = vunpack.c.l.b16 %v742
      %v816 = vunpack.c.l.b16 %v744
      %v817 = vunpack.c.l.b16 %v745
      %v818 = vunpack.c.l.b16 %v747
      %v819 = vunpack.c.l.b16 %v748
      %v820 = vpack.c.b16 %v789, %v788
      %v821 = vpack.c.b16 %v791, %v790
      %v822 = vpack.c.b16 %v793, %v792
      %v823 = vpack.c.b16 %v795, %v794
      %v824 = vpack.c.b16 %v797, %v796
      %v825 = vpack.c.b16 %v799, %v798
      %v826 = vpack.c.b16 %v801, %v800
      %v827 = vpack.c.b16 %v803, %v802
      %v828 = vpack.c.b16 %v805, %v804
      %v829 = vpack.c.b16 %v807, %v806
      %v830 = vpack.c.b16 %v809, %v808
      %v831 = vpack.c.b16 %v811, %v810
      %v832 = vpack.c.b16 %v813, %v812
      %v833 = vpack.c.b16 %v815, %v814
      %v834 = vpack.c.b16 %v817, %v816
      %v835 = vpack.c.b16 %v819, %v818
      %v852 = vunpack.c.l.b16 %v704
      %v853 = vunpack.c.l.b16 %v707
      %v854 = vunpack.c.l.b16 %v710
      %v855 = vunpack.c.l.b16 %v713
      %v856 = vunpack.c.l.b16 %v716
      %v857 = vunpack.c.l.b16 %v719
      %v858 = vunpack.c.l.b16 %v722
      %v859 = vunpack.c.l.b16 %v725
      %v860 = vunpack.c.l.b16 %v728
      %v861 = vunpack.c.l.b16 %v731
      %v862 = vunpack.c.l.b16 %v734
      %v863 = vunpack.c.l.b16 %v737
      %v864 = vunpack.c.l.b16 %v740
      %v865 = vunpack.c.l.b16 %v743
      %v866 = vunpack.c.l.b16 %v746
      %v867 = vunpack.c.l.b16 %v749
      %v868 = vpack.c.b16 %v852, %v852
      %v869 = vpack.c.b16 %v853, %v853
      %v870 = vpack.c.b16 %v854, %v854
      %v871 = vpack.c.b16 %v855, %v855
      %v872 = vpack.c.b16 %v856, %v856
      %v873 = vpack.c.b16 %v857, %v857
      %v874 = vpack.c.b16 %v858, %v858
      %v875 = vpack.c.b16 %v859, %v859
      %v876 = vpack.c.b16 %v860, %v860
      %v877 = vpack.c.b16 %v861, %v861
      %v878 = vpack.c.b16 %v862, %v862
      %v879 = vpack.c.b16 %v863, %v863
      %v880 = vpack.c.b16 %v864, %v864
      %v881 = vpack.c.b16 %v865, %v865
      %v882 = vpack.c.b16 %v866, %v866
      %v883 = vpack.c.b16 %v867, %v867
      %vm884 = vsmask.f32 7424
      %v886 = vshrl.u32 %v820, 16
      %v888 = vshll.u32 %v820, 16
      %v890 = vrot.slane %v888, 1
      %v891 = vor.u32 %v886, %v890
      %v893 = vshll.u32 %v868, 16
      %v895 = vrot.slane %v893, 1
      %v896 = vsel %vm884, %v891, %v895
      %v898 = vshrl.u32 %v821, 16
      %v900 = vshll.u32 %v821, 16
      %v902 = vrot.slane %v900, 1
      %v903 = vor.u32 %v898, %v902
      %v905 = vshll.u32 %v869, 16
      %v907 = vrot.slane %v905, 1
      %v908 = vsel %vm884, %v903, %v907
      %v910 = vshrl.u32 %v822, 16
      %v912 = vshll.u32 %v822, 16
      %v914 = vrot.slane %v912, 1
      %v915 = vor.u32 %v910, %v914
      %v917 = vshll.u32 %v870, 16
      %v919 = vrot.slane %v917, 1
      %v920 = vsel %vm884, %v915, %v919
      %v922 = vshrl.u32 %v823, 16
      %v924 = vshll.u32 %v823, 16
      %v926 = vrot.slane %v924, 1
      %v927 = vor.u32 %v922, %v926
      %v929 = vshll.u32 %v871, 16
      %v931 = vrot.slane %v929, 1
      %v932 = vsel %vm884, %v927, %v931
      %v934 = vshrl.u32 %v824, 16
      %v936 = vshll.u32 %v824, 16
      %v938 = vrot.slane %v936, 1
      %v939 = vor.u32 %v934, %v938
      %v941 = vshll.u32 %v872, 16
      %v943 = vrot.slane %v941, 1
      %v944 = vsel %vm884, %v939, %v943
      %v946 = vshrl.u32 %v825, 16
      %v948 = vshll.u32 %v825, 16
      %v950 = vrot.slane %v948, 1
      %v951 = vor.u32 %v946, %v950
      %v953 = vshll.u32 %v873, 16
      %v955 = vrot.slane %v953, 1
      %v956 = vsel %vm884, %v951, %v955
      %v958 = vshrl.u32 %v826, 16
      %v960 = vshll.u32 %v826, 16
      %v962 = vrot.slane %v960, 1
      %v963 = vor.u32 %v958, %v962
      %v965 = vshll.u32 %v874, 16
      %v967 = vrot.slane %v965, 1
      %v968 = vsel %vm884, %v963, %v967
      %v970 = vshrl.u32 %v827, 16
      %v972 = vshll.u32 %v827, 16
      %v974 = vrot.slane %v972, 1
      %v975 = vor.u32 %v970, %v974
      %v977 = vshll.u32 %v875, 16
      %v979 = vrot.slane %v977, 1
      %v980 = vsel %vm884, %v975, %v979
      %v982 = vshrl.u32 %v828, 16
      %v984 = vshll.u32 %v828, 16
      %v986 = vrot.slane %v984, 1
      %v987 = vor.u32 %v982, %v986
      %v989 = vshll.u32 %v876, 16
      %v991 = vrot.slane %v989, 1
      %v992 = vsel %vm884, %v987, %v991
      %v994 = vshrl.u32 %v829, 16
      %v996 = vshll.u32 %v829, 16
      %v998 = vrot.slane %v996, 1
      %v999 = vor.u32 %v994, %v998
      %v1001 = vshll.u32 %v877, 16
      %v1003 = vrot.slane %v1001, 1
      %v1004 = vsel %vm884, %v999, %v1003
      %v1006 = vshrl.u32 %v830, 16
      %v1008 = vshll.u32 %v830, 16
      %v1010 = vrot.slane %v1008, 1
      %v1011 = vor.u32 %v1006, %v1010
      %v1013 = vshll.u32 %v878, 16
      %v1015 = vrot.slane %v1013, 1
      %v1016 = vsel %vm884, %v1011, %v1015
      %v1018 = vshrl.u32 %v831, 16
      %v1020 = vshll.u32 %v831, 16
      %v1022 = vrot.slane %v1020, 1
      %v1023 = vor.u32 %v1018, %v1022
      %v1025 = vshll.u32 %v879, 16
      %v1027 = vrot.slane %v1025, 1
      %v1028 = vsel %vm884, %v1023, %v1027
      %v1030 = vshrl.u32 %v832, 16
      %v1032 = vshll.u32 %v832, 16
      %v1034 = vrot.slane %v1032, 1
      %v1035 = vor.u32 %v1030, %v1034
      %v1037 = vshll.u32 %v880, 16
      %v1039 = vrot.slane %v1037, 1
      %v1040 = vsel %vm884, %v1035, %v1039
      %v1042 = vshrl.u32 %v833, 16
      %v1044 = vshll.u32 %v833, 16
      %v1046 = vrot.slane %v1044, 1
      %v1047 = vor.u32 %v1042, %v1046
      %v1049 = vshll.u32 %v881, 16
      %v1051 = vrot.slane %v1049, 1
      %v1052 = vsel %vm884, %v1047, %v1051
      %v1054 = vshrl.u32 %v834, 16
      %v1056 = vshll.u32 %v834, 16
      %v1058 = vrot.slane %v1056, 1
      %v1059 = vor.u32 %v1054, %v1058
      %v1061 = vshll.u32 %v882, 16
      %v1063 = vrot.slane %v1061, 1
      %v1064 = vsel %vm884, %v1059, %v1063
      %v1066 = vshrl.u32 %v835, 16
      %v1068 = vshll.u32 %v835, 16
      %v1070 = vrot.slane %v1068, 1
      %v1071 = vor.u32 %v1066, %v1070
      %v1073 = vshll.u32 %v883, 16
      %v1075 = vrot.slane %v1073, 1
      %v1076 = vsel %vm884, %v1071, %v1075
      %1077 = vrot.lane.b32.xlu0 %v896, 64
      %v1078 = vpop.permute.xlu0 %1077
      %1079 = vrot.lane.b32.xlu0 %v908, 64
      %v1080 = vpop.permute.xlu0 %1079
      %1081 = vrot.lane.b32.xlu0 %v920, 64
      %v1082 = vpop.permute.xlu0 %1081
      %1083 = vrot.lane.b32.xlu0 %v932, 64
      %v1084 = vpop.permute.xlu0 %1083
      %1085 = vrot.lane.b32.xlu0 %v944, 64
      %v1086 = vpop.permute.xlu0 %1085
      %1087 = vrot.lane.b32.xlu0 %v956, 64
      %v1088 = vpop.permute.xlu0 %1087
      %1089 = vrot.lane.b32.xlu0 %v968, 64
      %v1090 = vpop.permute.xlu0 %1089
      %1091 = vrot.lane.b32.xlu0 %v980, 64
      %v1092 = vpop.permute.xlu0 %1091
      %1093 = vrot.lane.b32.xlu0 %v992, 64
      %v1094 = vpop.permute.xlu0 %1093
      %1095 = vrot.lane.b32.xlu0 %v1004, 64
      %v1096 = vpop.permute.xlu0 %1095
      %1097 = vrot.lane.b32.xlu0 %v1016, 64
      %v1098 = vpop.permute.xlu0 %1097
      %1099 = vrot.lane.b32.xlu0 %v1028, 64
      %v1100 = vpop.permute.xlu0 %1099
      %1101 = vrot.lane.b32.xlu0 %v1040, 64
      %v1102 = vpop.permute.xlu0 %1101
      %1103 = vrot.lane.b32.xlu0 %v1052, 64
      %v1104 = vpop.permute.xlu0 %1103
      %1105 = vrot.lane.b32.xlu0 %v1064, 64
      %v1106 = vpop.permute.xlu0 %1105
      %1107 = vrot.lane.b32.xlu0 %v1076, 64
      %v1108 = vpop.permute.xlu0 %1107
      %vm1109 = vcmask 1046528
      %v1110 = vrot.slane %v820, 1
      %v1111 = vrot.slane %v868, 1
      %v1112 = vsel %vm1109, %v1110, %v1111
      %v1113 = vrot.slane %v821, 1
      %v1114 = vrot.slane %v869, 1
      %v1115 = vsel %vm1109, %v1113, %v1114
      %v1116 = vrot.slane %v822, 1
      %v1117 = vrot.slane %v870, 1
      %v1118 = vsel %vm1109, %v1116, %v1117
      %v1119 = vrot.slane %v823, 1
      %v1120 = vrot.slane %v871, 1
      %v1121 = vsel %vm1109, %v1119, %v1120
      %v1122 = vrot.slane %v824, 1
      %v1123 = vrot.slane %v872, 1
      %v1124 = vsel %vm1109, %v1122, %v1123
      %v1125 = vrot.slane %v825, 1
      %v1126 = vrot.slane %v873, 1
      %v1127 = vsel %vm1109, %v1125, %v1126
      %v1128 = vrot.slane %v826, 1
      %v1129 = vrot.slane %v874, 1
      %v1130 = vsel %vm1109, %v1128, %v1129
      %v1131 = vrot.slane %v827, 1
      %v1132 = vrot.slane %v875, 1
      %v1133 = vsel %vm1109, %v1131, %v1132
      %v1134 = vrot.slane %v828, 1
      %v1135 = vrot.slane %v876, 1
      %v1136 = vsel %vm1109, %v1134, %v1135
      %v1137 = vrot.slane %v829, 1
      %v1138 = vrot.slane %v877, 1
      %v1139 = vsel %vm1109, %v1137, %v1138
      %v1140 = vrot.slane %v830, 1
      %v1141 = vrot.slane %v878, 1
      %v1142 = vsel %vm1109, %v1140, %v1141
      %v1143 = vrot.slane %v831, 1
      %v1144 = vrot.slane %v879, 1
      %v1145 = vsel %vm1109, %v1143, %v1144
      %v1146 = vrot.slane %v832, 1
      %v1147 = vrot.slane %v880, 1
      %v1148 = vsel %vm1109, %v1146, %v1147
      %v1149 = vrot.slane %v833, 1
      %v1150 = vrot.slane %v881, 1
      %v1151 = vsel %vm1109, %v1149, %v1150
      %v1152 = vrot.slane %v834, 1
      %v1153 = vrot.slane %v882, 1
      %v1154 = vsel %vm1109, %v1152, %v1153
      %v1155 = vrot.slane %v835, 1
      %v1156 = vrot.slane %v883, 1
      %v1157 = vsel %vm1109, %v1155, %v1156
      %v1160 = vunpack.c.l.b16 %v750
      %v1161 = vunpack.c.l.b16 %v751
      %v1162 = vpack.c.b16 %v1161, %v1160
      %1163 = vrot.lane.b32.xlu0 %v821, 64
      %v1164 = vpop.permute.xlu0 %1163
      %1165 = vrot.lane.b32.xlu0 %v822, 64
      %v1166 = vpop.permute.xlu0 %1165
      %1167 = vrot.lane.b32.xlu0 %v823, 64
      %v1168 = vpop.permute.xlu0 %1167
      %1169 = vrot.lane.b32.xlu0 %v824, 64
      %v1170 = vpop.permute.xlu0 %1169
      %1171 = vrot.lane.b32.xlu0 %v825, 64
      %v1172 = vpop.permute.xlu0 %1171
      %1173 = vrot.lane.b32.xlu0 %v826, 64
      %v1174 = vpop.permute.xlu0 %1173
      %1175 = vrot.lane.b32.xlu0 %v827, 64
      %v1176 = vpop.permute.xlu0 %1175
      %1177 = vrot.lane.b32.xlu0 %v828, 64
      %v1178 = vpop.permute.xlu0 %1177
      %1179 = vrot.lane.b32.xlu0 %v829, 64
      %v1180 = vpop.permute.xlu0 %1179
      %1181 = vrot.lane.b32.xlu0 %v830, 64
      %v1182 = vpop.permute.xlu0 %1181
      %1183 = vrot.lane.b32.xlu0 %v831, 64
      %v1184 = vpop.permute.xlu0 %1183
      %1185 = vrot.lane.b32.xlu0 %v832, 64
      %v1186 = vpop.permute.xlu0 %1185
      %1187 = vrot.lane.b32.xlu0 %v833, 64
      %v1188 = vpop.permute.xlu0 %1187
      %1189 = vrot.lane.b32.xlu0 %v834, 64
      %v1190 = vpop.permute.xlu0 %1189
      %1191 = vrot.lane.b32.xlu0 %v835, 64
      %v1192 = vpop.permute.xlu0 %1191
      %1193 = vrot.lane.b32.xlu0 %v1162, 64
      %v1194 = vpop.permute.xlu0 %1193
      %v1196 = vunpack.c.l.b16 %v752
      %v1197 = vpack.c.b16 %v1196, %v1196
      %v1199 = vshrl.u32 %v1162, 16
      %v1201 = vshll.u32 %v1162, 16
      %v1203 = vrot.slane %v1201, 1
      %v1204 = vor.u32 %v1199, %v1203
      %v1206 = vshll.u32 %v1197, 16
      %v1208 = vrot.slane %v1206, 1
      %v1209 = vsel %vm884, %v1204, %v1208
      %v1210 = vrot.slane %v1162, 1
      %v1211 = vrot.slane %v1197, 1
      %v1212 = vsel %vm1109, %v1210, %v1211
      %1213 = vrot.lane.b32.xlu0 %v1115, 64
      %v1214 = vpop.permute.xlu0 %1213
      %1215 = vrot.lane.b32.xlu0 %v1118, 64
      %v1216 = vpop.permute.xlu0 %1215
      %1217 = vrot.lane.b32.xlu0 %v1121, 64
      %v1218 = vpop.permute.xlu0 %1217
      %1219 = vrot.lane.b32.xlu0 %v1124, 64
      %v1220 = vpop.permute.xlu0 %1219
      %1221 = vrot.lane.b32.xlu0 %v1127, 64
      %v1222 = vpop.permute.xlu0 %1221
      %1223 = vrot.lane.b32.xlu0 %v1130, 64
      %v1224 = vpop.permute.xlu0 %1223
      %1225 = vrot.lane.b32.xlu0 %v1133, 64
      %v1226 = vpop.permute.xlu0 %1225
      %1227 = vrot.lane.b32.xlu0 %v1136, 64
      %v1228 = vpop.permute.xlu0 %1227
      %1229 = vrot.lane.b32.xlu0 %v1139, 64
      %v1230 = vpop.permute.xlu0 %1229
      %1231 = vrot.lane.b32.xlu0 %v1142, 64
      %v1232 = vpop.permute.xlu0 %1231
      %1233 = vrot.lane.b32.xlu0 %v1145, 64
      %v1234 = vpop.permute.xlu0 %1233
      %1235 = vrot.lane.b32.xlu0 %v1148, 64
      %v1236 = vpop.permute.xlu0 %1235
      %1237 = vrot.lane.b32.xlu0 %v1151, 64
      %v1238 = vpop.permute.xlu0 %1237
      %1239 = vrot.lane.b32.xlu0 %v1154, 64
      %v1240 = vpop.permute.xlu0 %1239
      %1241 = vrot.lane.b32.xlu0 %v1157, 64
      %v1242 = vpop.permute.xlu0 %1241
      %1243 = vrot.lane.b32.xlu0 %v1212, 64
      %v1244 = vpop.permute.xlu0 %1243
      %v1247 = vunpack.c.l.b16 %v753
      %v1248 = vunpack.c.l.b16 %v754
      %v1249 = vpack.c.b16 %v1248, %v1247
      %v1251 = vunpack.c.l.b16 %v755
      %v1252 = vpack.c.b16 %v1251, %v1251
      %v1254 = vshrl.u32 %v1249, 16
      %v1256 = vshll.u32 %v1249, 16
      %v1258 = vrot.slane %v1256, 1
      %v1259 = vor.u32 %v1254, %v1258
      %v1261 = vshll.u32 %v1252, 16
      %v1263 = vrot.slane %v1261, 1
      %v1264 = vsel %vm884, %v1259, %v1263
      %1265 = vrot.lane.b32.xlu0 %v1209, 64
      %v1266 = vpop.permute.xlu0 %1265
      %1267 = vrot.lane.b32.xlu0 %v1264, 64
      %v1268 = vpop.permute.xlu0 %1267
      %v1269 = vrot.slane %v1249, 1
      %v1270 = vrot.slane %v1252, 1
      %v1271 = vsel %vm1109, %v1269, %v1270
      %vm1272 = vcmask 523264
      %v1274 = vsel %vm1272, %v820, %v1078
      %v1277 = vsel %vm1272, %v821, %v1080
      %v1280 = vsel %vm1272, %v822, %v1082
      %v1283 = vsel %vm1272, %v823, %v1084
      %v1286 = vsel %vm1272, %v824, %v1086
      %v1289 = vsel %vm1272, %v825, %v1088
      %v1292 = vsel %vm1272, %v826, %v1090
      %v1295 = vsel %vm1272, %v827, %v1092
      %v1298 = vsel %vm1272, %v828, %v1094
      %v1301 = vsel %vm1272, %v829, %v1096
      %v1304 = vsel %vm1272, %v830, %v1098
      %v1307 = vsel %vm1272, %v831, %v1100
      %v1310 = vsel %vm1272, %v832, %v1102
      %v1313 = vsel %vm1272, %v833, %v1104
      %v1316 = vsel %vm1272, %v834, %v1106
      %v1319 = vsel %vm1272, %v835, %v1108
      %v1323 = vsel %vm1272, %v1112, %v1164
      %v1327 = vsel %vm1272, %v1115, %v1166
      %v1331 = vsel %vm1272, %v1118, %v1168
      %v1335 = vsel %vm1272, %v1121, %v1170
      %v1339 = vsel %vm1272, %v1124, %v1172
      %v1343 = vsel %vm1272, %v1127, %v1174
      %v1347 = vsel %vm1272, %v1130, %v1176
      %v1351 = vsel %vm1272, %v1133, %v1178
      %v1355 = vsel %vm1272, %v1136, %v1180
      %v1359 = vsel %vm1272, %v1139, %v1182
      %v1363 = vsel %vm1272, %v1142, %v1184
      %v1367 = vsel %vm1272, %v1145, %v1186
      %v1371 = vsel %vm1272, %v1148, %v1188
      %v1375 = vsel %vm1272, %v1151, %v1190
      %v1379 = vsel %vm1272, %v1154, %v1192
      %v1383 = vsel %vm1272, %v1157, %v1194
      %v1387 = vsel %vm1272, %v908, %v1214
      %v1391 = vsel %vm1272, %v920, %v1216
      %v1395 = vsel %vm1272, %v932, %v1218
      %v1399 = vsel %vm1272, %v944, %v1220
      %v1403 = vsel %vm1272, %v956, %v1222
      %v1407 = vsel %vm1272, %v968, %v1224
      %v1411 = vsel %vm1272, %v980, %v1226
      %v1415 = vsel %vm1272, %v992, %v1228
      %v1419 = vsel %vm1272, %v1004, %v1230
      %v1423 = vsel %vm1272, %v1016, %v1232
      %v1427 = vsel %vm1272, %v1028, %v1234
      %v1431 = vsel %vm1272, %v1040, %v1236
      %v1435 = vsel %vm1272, %v1052, %v1238
      %v1439 = vsel %vm1272, %v1064, %v1240
      %v1443 = vsel %vm1272, %v1076, %v1242
      %v1447 = vsel %vm1272, %v1209, %v1244
      %v1450 = vsel %vm1272, %v1162, %v1266
      %v1453 = vsel %vm1272, %v1249, %v1268
      %v1455 = vld [vmem:[%s1] sm:$0xf]
      %v1456 = vld [vmem:[%s1 + $0x4] sm:$0xf]
      %v1457 = vld [vmem:[%s1 + $0x8] sm:$0xf]
      %v1458 = vld [vmem:[%s1 + $0xc] sm:$0xf]
      %v1459 = vld [vmem:[%s1 + $0x10] sm:$0xf]
      %v1460 = vld [vmem:[%s1 + $0x14] sm:$0xf]
      %v1461 = vld [vmem:[%s1 + $0x18] sm:$0xf]
      %v1462 = vld [vmem:[%s1 + $0x1c] sm:$0xf]
      %v1463 = vld [vmem:[%s1 + $0x20] sm:$0xf]
      %v1464 = vld [vmem:[%s1 + $0x24] sm:$0xf]
      %v1465 = vld [vmem:[%s1 + $0x28] sm:$0xf]
      %v1466 = vld [vmem:[%s1 + $0x2c] sm:$0xf]
      %v1467 = vld [vmem:[%s1 + $0x30] sm:$0xf]
      %v1468 = vld [vmem:[%s1 + $0x34] sm:$0xf]
      %v1469 = vld [vmem:[%s1 + $0x38] sm:$0xf]
      %v1470 = vld [vmem:[%s1 + $0x3c] sm:$0xf]
      %v1471 = vld [vmem:[%s1 + $0x40] sm:$0xf]
      %v1472 = vld [vmem:[%s1 + $0x44] sm:$0xf]
      %v1473 = vld [vmem:[%s1 + $0x48] sm:$0xf]
      %v1474 = vld [vmem:[%s1 + $0x4c] sm:$0xf]
      %v1475 = vld [vmem:[%s1 + $0x50] sm:$0xf]
      %v1476 = vld [vmem:[%s1 + $0x54] sm:$0xf]
      %v1477 = vld [vmem:[%s1 + $0x58] sm:$0xf]
      %v1478 = vld [vmem:[%s1 + $0x5c] sm:$0xf]
      %v1479 = vld [vmem:[%s1 + $0x60] sm:$0xf]
      %v1480 = vld [vmem:[%s1 + $0x64] sm:$0xf]
      %v1481 = vld [vmem:[%s1 + $0x68] sm:$0xf]
      %v1482 = vld [vmem:[%s1 + $0x6c] sm:$0xf]
      %v1483 = vld [vmem:[%s1 + $0x70] sm:$0xf]
      %v1484 = vld [vmem:[%s1 + $0x74] sm:$0xf]
      %v1485 = vld [vmem:[%s1 + $0x78] sm:$0xf]
      %v1486 = vld [vmem:[%s1 + $0x7c] sm:$0xf]
      %v1487 = vld [vmem:[%s1 + $0x80] sm:$0xf]
      %v1488 = vld [vmem:[%s1 + $0x84] sm:$0xf]
      %v1489 = vld [vmem:[%s1 + $0x88] sm:$0xf]
      %v1490 = vld [vmem:[%s1 + $0x8c] sm:$0xf]
      %v1491 = vld [vmem:[%s1 + $0x90] sm:$0xf]
      %v1492 = vld [vmem:[%s1 + $0x94] sm:$0xf]
      %v1493 = vld [vmem:[%s1 + $0x98] sm:$0xf]
      %v1494 = vld [vmem:[%s1 + $0x9c] sm:$0xf]
      %v1495 = vld [vmem:[%s1 + $0xa0] sm:$0xf]
      %v1496 = vld [vmem:[%s1 + $0xa4] sm:$0xf]
      %v1497 = vld [vmem:[%s1 + $0xa8] sm:$0xf]
      %v1498 = vld [vmem:[%s1 + $0xac] sm:$0xf]
      %v1499 = vld [vmem:[%s1 + $0xb0] sm:$0xf]
      %v1500 = vld [vmem:[%s1 + $0xb4] sm:$0xf]
      %v1501 = vld [vmem:[%s1 + $0xb8] sm:$0xf]
      %v1502 = vld [vmem:[%s1 + $0xbc] sm:$0xf]
      %v1503 = vld [vmem:[%s1 + $0xc0] sm:$0xf]
      %v1504 = vld [vmem:[%s1 + $0xc4] sm:$0xf]
      %v1505 = vld [vmem:[%s1 + $0xc8] sm:$0xf]
      %v1506 = vld [vmem:[%s1 + $0xcc] sm:$0xf]
      %v1507 = vld [vmem:[%s1 + $0xd0] sm:$0xf]
      %v1508 = vld [vmem:[%s1 + $0xd4] sm:$0xf]
      %v1509 = vld [vmem:[%s1 + $0xd8] sm:$0xf]
      %v1510 = vld [vmem:[%s1 + $0xdc] sm:$0xf]
      %v1511 = vld [vmem:[%s1 + $0xe0] sm:$0xf]
      %v1512 = vld [vmem:[%s1 + $0xe4] sm:$0xf]
      %v1513 = vld [vmem:[%s1 + $0xe8] sm:$0xf]
      %v1514 = vld [vmem:[%s1 + $0xec] sm:$0xf]
      %v1515 = vld [vmem:[%s1 + $0xf0] sm:$0xf]
      %v1516 = vld [vmem:[%s1 + $0xf4] sm:$0xf]
      %v1517 = vld [vmem:[%s1 + $0xf8] sm:$0xf]
      %v1518 = vld [vmem:[%s1 + $0xfc] sm:$0xf]
      %v1519 = vld [vmem:[%s1 + $0x100] sm:$0xf]
      %v1520 = vld [vmem:[%s1 + $0x104] sm:$0xf]
      %v1521 = vld [vmem:[%s1 + $0x108] sm:$0xf]
      %v1522 = vld [vmem:[%s1 + $0x10c] sm:$0xf]
      %v1523 = vld [vmem:[%s1 + $0x110] sm:$0xf]
      %v1524 = vld [vmem:[%s1 + $0x114] sm:$0xf]
      %v1525 = vld [vmem:[%s1 + $0x118] sm:$0xf]
      %v1526 = vld [vmem:[%s1 + $0x11c] sm:$0xf]
      %v1527 = vld [vmem:[%s2] sm:$0x1]
      %v1529 = vlaneseq
      %v1530 = vshrl.u32 %v1529, 7
      %v1531 = vsub.s32 0, %v1530
      %v1532 = vrot.slane %v1527, %v1531
      %v1606 = vunpack.c.l.b16 %v1455
      %v1607 = vunpack.c.l.b16 %v1456
      %v1608 = vunpack.c.l.b16 %v1457
      %v1609 = vunpack.c.l.b16 %v1458
      %v1610 = vunpack.c.l.b16 %v1459
      %v1611 = vunpack.c.l.b16 %v1460
      %v1612 = vunpack.c.l.b16 %v1461
      %v1613 = vunpack.c.l.b16 %v1462
      %v1614 = vunpack.c.l.b16 %v1463
      %v1615 = vunpack.c.l.b16 %v1464
      %v1616 = vunpack.c.l.b16 %v1465
      %v1617 = vunpack.c.l.b16 %v1466
      %v1618 = vunpack.c.l.b16 %v1467
      %v1619 = vunpack.c.l.b16 %v1468
      %v1620 = vunpack.c.l.b16 %v1469
      %v1621 = vunpack.c.l.b16 %v1470
      %v1622 = vunpack.c.l.b16 %v1471
      %v1623 = vunpack.c.l.b16 %v1472
      %v1624 = vunpack.c.l.b16 %v1473
      %v1625 = vunpack.c.l.b16 %v1474
      %v1626 = vunpack.c.l.b16 %v1475
      %v1627 = vunpack.c.l.b16 %v1476
      %v1628 = vunpack.c.l.b16 %v1477
      %v1629 = vunpack.c.l.b16 %v1478
      %v1630 = vunpack.c.l.b16 %v1479
      %v1631 = vunpack.c.l.b16 %v1480
      %v1632 = vunpack.c.l.b16 %v1481
      %v1633 = vunpack.c.l.b16 %v1482
      %v1634 = vunpack.c.l.b16 %v1483
      %v1635 = vunpack.c.l.b16 %v1484
      %v1636 = vunpack.c.l.b16 %v1485
      %v1637 = vunpack.c.l.b16 %v1486
      %v1638 = vunpack.c.l.b16 %v1487
      %v1639 = vunpack.c.l.b16 %v1488
      %v1640 = vunpack.c.l.b16 %v1489
      %v1641 = vunpack.c.l.b16 %v1490
      %v1642 = vunpack.c.l.b16 %v1491
      %v1643 = vunpack.c.l.b16 %v1492
      %v1644 = vunpack.c.l.b16 %v1493
      %v1645 = vunpack.c.l.b16 %v1494
      %v1646 = vunpack.c.l.b16 %v1495
      %v1647 = vunpack.c.l.b16 %v1496
      %v1648 = vunpack.c.l.b16 %v1497
      %v1649 = vunpack.c.l.b16 %v1498
      %v1650 = vunpack.c.l.b16 %v1499
      %v1651 = vunpack.c.l.b16 %v1500
      %v1652 = vunpack.c.l.b16 %v1501
      %v1653 = vunpack.c.l.b16 %v1502
      %v1654 = vunpack.c.l.b16 %v1503
      %v1655 = vunpack.c.l.b16 %v1504
      %v1656 = vunpack.c.l.b16 %v1505
      %v1657 = vunpack.c.l.b16 %v1506
      %v1658 = vunpack.c.l.b16 %v1507
      %v1659 = vunpack.c.l.b16 %v1508
      %v1660 = vunpack.c.l.b16 %v1509
      %v1661 = vunpack.c.l.b16 %v1510
      %v1662 = vunpack.c.l.b16 %v1511
      %v1663 = vunpack.c.l.b16 %v1512
      %v1664 = vunpack.c.l.b16 %v1513
      %v1665 = vunpack.c.l.b16 %v1514
      %v1666 = vunpack.c.l.b16 %v1515
      %v1667 = vunpack.c.l.b16 %v1516
      %v1668 = vunpack.c.l.b16 %v1517
      %v1669 = vunpack.c.l.b16 %v1518
      %v1670 = vunpack.c.l.b16 %v1519
      %v1671 = vunpack.c.l.b16 %v1520
      %v1672 = vunpack.c.l.b16 %v1521
      %v1673 = vunpack.c.l.b16 %v1522
      %v1674 = vunpack.c.l.b16 %v1523
      %v1675 = vunpack.c.l.b16 %v1524
      %v1676 = vunpack.c.l.b16 %v1525
      %v1677 = vunpack.c.l.b16 %v1526
      %v1678 = vpack.c.b16 %v1607, %v1606
      %v1679 = vpack.c.b16 %v1609, %v1608
      %v1680 = vpack.c.b16 %v1611, %v1610
      %v1681 = vpack.c.b16 %v1613, %v1612
      %v1682 = vpack.c.b16 %v1615, %v1614
      %v1683 = vpack.c.b16 %v1617, %v1616
      %v1684 = vpack.c.b16 %v1619, %v1618
      %v1685 = vpack.c.b16 %v1621, %v1620
      %v1686 = vpack.c.b16 %v1623, %v1622
      %v1687 = vpack.c.b16 %v1625, %v1624
      %v1688 = vpack.c.b16 %v1627, %v1626
      %v1689 = vpack.c.b16 %v1629, %v1628
      %v1690 = vpack.c.b16 %v1631, %v1630
      %v1691 = vpack.c.b16 %v1633, %v1632
      %v1692 = vpack.c.b16 %v1635, %v1634
      %v1693 = vpack.c.b16 %v1637, %v1636
      %v1694 = vpack.c.b16 %v1639, %v1638
      %v1695 = vpack.c.b16 %v1641, %v1640
      %v1696 = vpack.c.b16 %v1643, %v1642
      %v1697 = vpack.c.b16 %v1645, %v1644
      %v1698 = vpack.c.b16 %v1647, %v1646
      %v1699 = vpack.c.b16 %v1649, %v1648
      %v1700 = vpack.c.b16 %v1651, %v1650
      %v1701 = vpack.c.b16 %v1653, %v1652
      %v1702 = vpack.c.b16 %v1655, %v1654
      %v1703 = vpack.c.b16 %v1657, %v1656
      %v1704 = vpack.c.b16 %v1659, %v1658
      %v1705 = vpack.c.b16 %v1661, %v1660
      %v1706 = vpack.c.b16 %v1663, %v1662
      %v1707 = vpack.c.b16 %v1665, %v1664
      %v1708 = vpack.c.b16 %v1667, %v1666
      %v1709 = vpack.c.b16 %v1669, %v1668
      %v1710 = vpack.c.b16 %v1671, %v1670
      %v1711 = vpack.c.b16 %v1673, %v1672
      %v1712 = vpack.c.b16 %v1675, %v1674
      %v1713 = vpack.c.b16 %v1677, %v1676
      %v1750 = vsel %vm1272, %v1118, 0
      %v1752 = vsel %vm1272, %v1121, 0
      %v1754 = vsel %vm1272, %v1124, 0
      %v1756 = vsel %vm1272, %v1127, 0
      %v1758 = vsel %vm1272, %v1130, 0
      %v1760 = vsel %vm1272, %v1133, 0
      %v1762 = vsel %vm1272, %v1136, 0
      %v1764 = vsel %vm1272, %v1139, 0
      %v1766 = vsel %vm1272, %v1142, 0
      %v1768 = vsel %vm1272, %v1145, 0
      %v1770 = vsel %vm1272, %v1148, 0
      %v1772 = vsel %vm1272, %v1151, 0
      %v1774 = vsel %vm1272, %v1154, 0
      %v1776 = vsel %vm1272, %v1157, 0
      %v1779 = vsel %vm1272, %v1212, 0
      %v1782 = vsel %vm1272, %v1271, 0
      %1784 = vmatprep.subr.bf16.mxu0 0
      %1785 = vmatpush1.bf16.msra.mxu0 %v1685
      %1786 = vmatprep.subr.bf16.mxu0 0
      %1787 = vmatpush1.bf16.msra.mxu0 %v1684
      %1788 = vmatprep.subr.bf16.mxu0 0
      %1789 = vmatpush1.bf16.msra.mxu0 %v1683
      %1790 = vmatprep.subr.bf16.mxu0 0
      %1791 = vmatpush1.bf16.msra.mxu0 %v1682
      %1792 = vmatprep.subr.bf16.mxu0 0
      %1793 = vmatpush1.bf16.msra.mxu0 %v1681
      %1794 = vmatprep.subr.bf16.mxu0 0
      %1795 = vmatpush1.bf16.msra.mxu0 %v1680
      %1796 = vmatprep.subr.bf16.mxu0 0
      %1797 = vmatpush1.bf16.msra.mxu0 %v1679
      %1798 = vmatprep.subr.bf16.mxu0 0
      %1799 = vmatpush1.bf16.msra.mxu0 %v1678
      %1800 = vmatprep.subr.bf16.mxu0 0
      %1801 = vmatpush2.bf16.msra.mxu0 %v1693
      %1802 = vmatprep.subr.bf16.mxu0 0
      %1803 = vmatpush2.bf16.msra.mxu0 %v1692
      %1804 = vmatprep.subr.bf16.mxu0 0
      %1805 = vmatpush2.bf16.msra.mxu0 %v1691
      %1806 = vmatprep.subr.bf16.mxu0 0
      %1807 = vmatpush2.bf16.msra.mxu0 %v1690
      %1808 = vmatprep.subr.bf16.mxu0 0
      %1809 = vmatpush2.bf16.msra.mxu0 %v1689
      %1810 = vmatprep.subr.bf16.mxu0 0
      %1811 = vmatpush2.bf16.msra.mxu0 %v1688
      %1812 = vmatprep.subr.bf16.mxu0 0
      %1813 = vmatpush2.bf16.msra.mxu0 %v1687
      %1814 = vmatprep.subr.bf16.mxu0 0
      %1815 = vmatpush2.bf16.msra.mxu0 %v1686
      %1816 = vmatprep.mubr.bf16.mxu0 %v1323
      %1817 = vmatmul.mubr.bf16.gmra.mxu0 %v1274
      %v1818 = vpop.f32.mrf.mxu0
      %v1819 = vadd.f32 %v1532, %v1818
      %v1820 = vpop.f32.mrf.mxu0
      %v1821 = vpop.f32.mrf.mxu0
      %v1822 = vadd.f32 %v1532, %v1821
      %v1823 = vpop.f32.mrf.mxu0
      %1824 = vmatprep.mubr.bf16.mxu0 %v1327
      %1825 = vmatmul.mubr.bf16.gmra.mxu0 %v1277
      %v1826 = vpop.f32.mrf.mxu0
      %v1827 = vadd.f32 %v1532, %v1826
      %v1828 = vpop.f32.mrf.mxu0
      %v1829 = vpop.f32.mrf.mxu0
      %v1830 = vadd.f32 %v1532, %v1829
      %v1831 = vpop.f32.mrf.mxu0
      %1832 = vmatprep.mubr.bf16.mxu0 %v1331
      %1833 = vmatmul.mubr.bf16.gmra.mxu0 %v1280
      %v1834 = vpop.f32.mrf.mxu0
      %v1835 = vadd.f32 %v1532, %v1834
      %v1836 = vpop.f32.mrf.mxu0
      %v1837 = vpop.f32.mrf.mxu0
      %v1838 = vadd.f32 %v1532, %v1837
      %v1839 = vpop.f32.mrf.mxu0
      %1840 = vmatprep.mubr.bf16.mxu0 %v1335
      %1841 = vmatmul.mubr.bf16.gmra.mxu0 %v1283
      %v1842 = vpop.f32.mrf.mxu0
      %v1843 = vadd.f32 %v1532, %v1842
      %v1844 = vpop.f32.mrf.mxu0
      %v1845 = vpop.f32.mrf.mxu0
      %v1846 = vadd.f32 %v1532, %v1845
      %v1847 = vpop.f32.mrf.mxu0
      %1848 = vmatprep.mubr.bf16.mxu0 %v1339
      %1849 = vmatmul.mubr.bf16.gmra.mxu0 %v1286
      %v1850 = vpop.f32.mrf.mxu0
      %v1851 = vadd.f32 %v1532, %v1850
      %v1852 = vpop.f32.mrf.mxu0
      %v1853 = vpop.f32.mrf.mxu0
      %v1854 = vadd.f32 %v1532, %v1853
      %v1855 = vpop.f32.mrf.mxu0
      %1856 = vmatprep.mubr.bf16.mxu0 %v1343
      %1857 = vmatmul.mubr.bf16.gmra.mxu0 %v1289
      %v1858 = vpop.f32.mrf.mxu0
      %v1859 = vadd.f32 %v1532, %v1858
      %v1860 = vpop.f32.mrf.mxu0
      %v1861 = vpop.f32.mrf.mxu0
      %v1862 = vadd.f32 %v1532, %v1861
      %v1863 = vpop.f32.mrf.mxu0
      %1864 = vmatprep.mubr.bf16.mxu0 %v1347
      %1865 = vmatmul.mubr.bf16.gmra.mxu0 %v1292
      %v1866 = vpop.f32.mrf.mxu0
      %v1867 = vadd.f32 %v1532, %v1866
      %v1868 = vpop.f32.mrf.mxu0
      %v1869 = vpop.f32.mrf.mxu0
      %v1870 = vadd.f32 %v1532, %v1869
      %v1871 = vpop.f32.mrf.mxu0
      %1872 = vmatprep.mubr.bf16.mxu0 %v1351
      %1873 = vmatmul.mubr.bf16.gmra.mxu0 %v1295
      %v1874 = vpop.f32.mrf.mxu0
      %v1875 = vadd.f32 %v1532, %v1874
      %v1876 = vpop.f32.mrf.mxu0
      %v1877 = vpop.f32.mrf.mxu0
      %v1878 = vadd.f32 %v1532, %v1877
      %v1879 = vpop.f32.mrf.mxu0
      %1880 = vmatprep.mubr.bf16.mxu0 %v1355
      %1881 = vmatmul.mubr.bf16.gmra.mxu0 %v1298
      %v1882 = vpop.f32.mrf.mxu0
      %v1883 = vadd.f32 %v1532, %v1882
      %v1884 = vpop.f32.mrf.mxu0
      %v1885 = vpop.f32.mrf.mxu0
      %v1886 = vadd.f32 %v1532, %v1885
      %v1887 = vpop.f32.mrf.mxu0
      %1888 = vmatprep.mubr.bf16.mxu0 %v1359
      %1889 = vmatmul.mubr.bf16.gmra.mxu0 %v1301
      %v1890 = vpop.f32.mrf.mxu0
      %v1891 = vadd.f32 %v1532, %v1890
      %v1892 = vpop.f32.mrf.mxu0
      %v1893 = vpop.f32.mrf.mxu0
      %v1894 = vadd.f32 %v1532, %v1893
      %v1895 = vpop.f32.mrf.mxu0
      %1896 = vmatprep.mubr.bf16.mxu0 %v1363
      %1897 = vmatmul.mubr.bf16.gmra.mxu0 %v1304
      %v1898 = vpop.f32.mrf.mxu0
      %v1899 = vadd.f32 %v1532, %v1898
      %v1900 = vpop.f32.mrf.mxu0
      %v1901 = vpop.f32.mrf.mxu0
      %v1902 = vadd.f32 %v1532, %v1901
      %v1903 = vpop.f32.mrf.mxu0
      %1904 = vmatprep.mubr.bf16.mxu0 %v1367
      %1905 = vmatmul.mubr.bf16.gmra.mxu0 %v1307
      %v1906 = vpop.f32.mrf.mxu0
      %v1907 = vadd.f32 %v1532, %v1906
      %v1908 = vpop.f32.mrf.mxu0
      %v1909 = vpop.f32.mrf.mxu0
      %v1910 = vadd.f32 %v1532, %v1909
      %v1911 = vpop.f32.mrf.mxu0
      %1912 = vmatprep.mubr.bf16.mxu0 %v1371
      %1913 = vmatmul.mubr.bf16.gmra.mxu0 %v1310
      %v1914 = vpop.f32.mrf.mxu0
      %v1915 = vadd.f32 %v1532, %v1914
      %v1916 = vpop.f32.mrf.mxu0
      %v1917 = vpop.f32.mrf.mxu0
      %v1918 = vadd.f32 %v1532, %v1917
      %v1919 = vpop.f32.mrf.mxu0
      %1920 = vmatprep.mubr.bf16.mxu0 %v1375
      %1921 = vmatmul.mubr.bf16.gmra.mxu0 %v1313
      %v1922 = vpop.f32.mrf.mxu0
      %v1923 = vadd.f32 %v1532, %v1922
      %v1924 = vpop.f32.mrf.mxu0
      %v1925 = vpop.f32.mrf.mxu0
      %v1926 = vadd.f32 %v1532, %v1925
      %v1927 = vpop.f32.mrf.mxu0
      %1928 = vmatprep.mubr.bf16.mxu0 %v1379
      %1929 = vmatmul.mubr.bf16.gmra.mxu0 %v1316
      %v1930 = vpop.f32.mrf.mxu0
      %v1931 = vadd.f32 %v1532, %v1930
      %v1932 = vpop.f32.mrf.mxu0
      %v1933 = vpop.f32.mrf.mxu0
      %v1934 = vadd.f32 %v1532, %v1933
      %v1935 = vpop.f32.mrf.mxu0
      %1936 = vmatprep.mubr.bf16.mxu0 %v1383
      %1937 = vmatmul.mubr.bf16.gmra.mxu0 %v1319
      %v1938 = vpop.f32.mrf.mxu0
      %v1939 = vadd.f32 %v1532, %v1938
      %v1940 = vpop.f32.mrf.mxu0
      %v1941 = vpop.f32.mrf.mxu0
      %v1942 = vadd.f32 %v1532, %v1941
      %v1943 = vpop.f32.mrf.mxu0
      %1944 = vdwg.mxu0
      %1945 = vmatprep.subr.bf16.mxu0 0
      %1946 = vmatpush1.bf16.msra.mxu0 %v1701
      %1947 = vmatprep.subr.bf16.mxu0 0
      %1948 = vmatpush1.bf16.msra.mxu0 %v1700
      %1949 = vmatprep.subr.bf16.mxu0 0
      %1950 = vmatpush1.bf16.msra.mxu0 %v1699
      %1951 = vmatprep.subr.bf16.mxu0 0
      %1952 = vmatpush1.bf16.msra.mxu0 %v1698
      %1953 = vmatprep.subr.bf16.mxu0 0
      %1954 = vmatpush1.bf16.msra.mxu0 %v1697
      %1955 = vmatprep.subr.bf16.mxu0 0
      %1956 = vmatpush1.bf16.msra.mxu0 %v1696
      %1957 = vmatprep.subr.bf16.mxu0 0
      %1958 = vmatpush1.bf16.msra.mxu0 %v1695
      %1959 = vmatprep.subr.bf16.mxu0 0
      %1960 = vmatpush1.bf16.msra.mxu0 %v1694
      %1961 = vmatprep.subr.bf16.mxu0 0
      %1962 = vmatpush2.bf16.msra.mxu0 %v1709
      %1963 = vmatprep.subr.bf16.mxu0 0
      %1964 = vmatpush2.bf16.msra.mxu0 %v1708
      %1965 = vmatprep.subr.bf16.mxu0 0
      %1966 = vmatpush2.bf16.msra.mxu0 %v1707
      %1967 = vmatprep.subr.bf16.mxu0 0
      %1968 = vmatpush2.bf16.msra.mxu0 %v1706
      %1969 = vmatprep.subr.bf16.mxu0 0
      %1970 = vmatpush2.bf16.msra.mxu0 %v1705
      %1971 = vmatprep.subr.bf16.mxu0 0
      %1972 = vmatpush2.bf16.msra.mxu0 %v1704
      %1973 = vmatprep.subr.bf16.mxu0 0
      %1974 = vmatpush2.bf16.msra.mxu0 %v1703
      %1975 = vmatprep.subr.bf16.mxu0 0
      %1976 = vmatpush2.bf16.msra.mxu0 %v1702
      %1977 = vmatprep.mubr.bf16.mxu0 %v1280
      %1978 = vmatmul.mubr.bf16.gmra.mxu0 %v1387
      %v1979 = vpop.f32.mrf.mxu0
      %v1980 = vadd.f32 %v1819, %v1979
      %v1981 = vpop.f32.mrf.mxu0
      %v1982 = vpop.f32.mrf.mxu0
      %v1983 = vadd.f32 %v1822, %v1982
      %v1984 = vpop.f32.mrf.mxu0
      %1985 = vmatprep.mubr.bf16.mxu0 %v1283
      %1986 = vmatmul.mubr.bf16.gmra.mxu0 %v1391
      %v1987 = vpop.f32.mrf.mxu0
      %v1988 = vadd.f32 %v1827, %v1987
      %v1989 = vpop.f32.mrf.mxu0
      %v1990 = vpop.f32.mrf.mxu0
      %v1991 = vadd.f32 %v1830, %v1990
      %v1992 = vpop.f32.mrf.mxu0
      %1993 = vmatprep.mubr.bf16.mxu0 %v1286
      %1994 = vmatmul.mubr.bf16.gmra.mxu0 %v1395
      %v1995 = vpop.f32.mrf.mxu0
      %v1996 = vadd.f32 %v1835, %v1995
      %v1997 = vpop.f32.mrf.mxu0
      %v1998 = vpop.f32.mrf.mxu0
      %v1999 = vadd.f32 %v1838, %v1998
      %v2000 = vpop.f32.mrf.mxu0
      %2001 = vmatprep.mubr.bf16.mxu0 %v1289
      %2002 = vmatmul.mubr.bf16.gmra.mxu0 %v1399
      %v2003 = vpop.f32.mrf.mxu0
      %v2004 = vadd.f32 %v1843, %v2003
      %v2005 = vpop.f32.mrf.mxu0
      %v2006 = vpop.f32.mrf.mxu0
      %v2007 = vadd.f32 %v1846, %v2006
      %v2008 = vpop.f32.mrf.mxu0
      %2009 = vmatprep.mubr.bf16.mxu0 %v1292
      %2010 = vmatmul.mubr.bf16.gmra.mxu0 %v1403
      %v2011 = vpop.f32.mrf.mxu0
      %v2012 = vadd.f32 %v1851, %v2011
      %v2013 = vpop.f32.mrf.mxu0
      %v2014 = vpop.f32.mrf.mxu0
      %v2015 = vadd.f32 %v1854, %v2014
      %v2016 = vpop.f32.mrf.mxu0
      %2017 = vmatprep.mubr.bf16.mxu0 %v1295
      %2018 = vmatmul.mubr.bf16.gmra.mxu0 %v1407
      %v2019 = vpop.f32.mrf.mxu0
      %v2020 = vadd.f32 %v1859, %v2019
      %v2021 = vpop.f32.mrf.mxu0
      %v2022 = vpop.f32.mrf.mxu0
      %v2023 = vadd.f32 %v1862, %v2022
      %v2024 = vpop.f32.mrf.mxu0
      %2025 = vmatprep.mubr.bf16.mxu0 %v1298
      %2026 = vmatmul.mubr.bf16.gmra.mxu0 %v1411
      %v2027 = vpop.f32.mrf.mxu0
      %v2028 = vadd.f32 %v1867, %v2027
      %v2029 = vpop.f32.mrf.mxu0
      %v2030 = vpop.f32.mrf.mxu0
      %v2031 = vadd.f32 %v1870, %v2030
      %v2032 = vpop.f32.mrf.mxu0
      %2033 = vmatprep.mubr.bf16.mxu0 %v1301
      %2034 = vmatmul.mubr.bf16.gmra.mxu0 %v1415
      %v2035 = vpop.f32.mrf.mxu0
      %v2036 = vadd.f32 %v1875, %v2035
      %v2037 = vpop.f32.mrf.mxu0
      %v2038 = vpop.f32.mrf.mxu0
      %v2039 = vadd.f32 %v1878, %v2038
      %v2040 = vpop.f32.mrf.mxu0
      %2041 = vmatprep.mubr.bf16.mxu0 %v1304
      %2042 = vmatmul.mubr.bf16.gmra.mxu0 %v1419
      %v2043 = vpop.f32.mrf.mxu0
      %v2044 = vadd.f32 %v1883, %v2043
      %v2045 = vpop.f32.mrf.mxu0
      %v2046 = vpop.f32.mrf.mxu0
      %v2047 = vadd.f32 %v1886, %v2046
      %v2048 = vpop.f32.mrf.mxu0
      %2049 = vmatprep.mubr.bf16.mxu0 %v1307
      %2050 = vmatmul.mubr.bf16.gmra.mxu0 %v1423
      %v2051 = vpop.f32.mrf.mxu0
      %v2052 = vadd.f32 %v1891, %v2051
      %v2053 = vpop.f32.mrf.mxu0
      %v2054 = vpop.f32.mrf.mxu0
      %v2055 = vadd.f32 %v1894, %v2054
      %v2056 = vpop.f32.mrf.mxu0
      %2057 = vmatprep.mubr.bf16.mxu0 %v1310
      %2058 = vmatmul.mubr.bf16.gmra.mxu0 %v1427
      %v2059 = vpop.f32.mrf.mxu0
      %v2060 = vadd.f32 %v1899, %v2059
      %v2061 = vpop.f32.mrf.mxu0
      %v2062 = vpop.f32.mrf.mxu0
      %v2063 = vadd.f32 %v1902, %v2062
      %v2064 = vpop.f32.mrf.mxu0
      %2065 = vmatprep.mubr.bf16.mxu0 %v1313
      %2066 = vmatmul.mubr.bf16.gmra.mxu0 %v1431
      %v2067 = vpop.f32.mrf.mxu0
      %v2068 = vadd.f32 %v1907, %v2067
      %v2069 = vpop.f32.mrf.mxu0
      %v2070 = vpop.f32.mrf.mxu0
      %v2071 = vadd.f32 %v1910, %v2070
      %v2072 = vpop.f32.mrf.mxu0
      %2073 = vmatprep.mubr.bf16.mxu0 %v1316
      %2074 = vmatmul.mubr.bf16.gmra.mxu0 %v1435
      %v2075 = vpop.f32.mrf.mxu0
      %v2076 = vadd.f32 %v1915, %v2075
      %v2077 = vpop.f32.mrf.mxu0
      %v2078 = vpop.f32.mrf.mxu0
      %v2079 = vadd.f32 %v1918, %v2078
      %v2080 = vpop.f32.mrf.mxu0
      %2081 = vmatprep.mubr.bf16.mxu0 %v1319
      %2082 = vmatmul.mubr.bf16.gmra.mxu0 %v1439
      %v2083 = vpop.f32.mrf.mxu0
      %v2084 = vadd.f32 %v1923, %v2083
      %v2085 = vpop.f32.mrf.mxu0
      %v2086 = vpop.f32.mrf.mxu0
      %v2087 = vadd.f32 %v1926, %v2086
      %v2088 = vpop.f32.mrf.mxu0
      %2089 = vmatprep.mubr.bf16.mxu0 %v1450
      %2090 = vmatmul.mubr.bf16.gmra.mxu0 %v1443
      %v2091 = vpop.f32.mrf.mxu0
      %v2092 = vadd.f32 %v1931, %v2091
      %v2093 = vpop.f32.mrf.mxu0
      %v2094 = vpop.f32.mrf.mxu0
      %v2095 = vadd.f32 %v1934, %v2094
      %v2096 = vpop.f32.mrf.mxu0
      %2097 = vmatprep.mubr.bf16.mxu0 %v1453
      %2098 = vmatmul.mubr.bf16.gmra.mxu0 %v1447
      %v2099 = vpop.f32.mrf.mxu0
      %v2100 = vadd.f32 %v1939, %v2099
      %v2101 = vpop.f32.mrf.mxu0
      %v2102 = vpop.f32.mrf.mxu0
      %v2103 = vadd.f32 %v1942, %v2102
      %v2104 = vpop.f32.mrf.mxu0
      %2105 = vdwg.mxu0
      %2106 = vmatprep.subr.bf16.mxu0 0
      %2107 = vmatpush1.bf16.msra.mxu0 0
      %2108 = vmatprep.subr.bf16.mxu0 0
      %2109 = vmatpush1.bf16.msra.mxu0 0
      %2110 = vmatprep.subr.bf16.mxu0 0
      %2111 = vmatpush1.bf16.msra.mxu0 0
      %2112 = vmatprep.subr.bf16.mxu0 0
      %2113 = vmatpush1.bf16.msra.mxu0 0
      %2114 = vmatprep.subr.bf16.mxu0 0
      %2115 = vmatpush1.bf16.msra.mxu0 %v1713
      %2116 = vmatprep.subr.bf16.mxu0 0
      %2117 = vmatpush1.bf16.msra.mxu0 %v1712
      %2118 = vmatprep.subr.bf16.mxu0 0
      %2119 = vmatpush1.bf16.msra.mxu0 %v1711
      %2120 = vmatprep.subr.bf16.mxu0 0
      %2121 = vmatpush1.bf16.msra.mxu0 %v1710
      %2122 = vmatprep.subr.bf16.mxu0 0
      %2123 = vmatpush2.bf16.msra.mxu0 0
      %2124 = vmatprep.subr.bf16.mxu0 0
      %2125 = vmatpush2.bf16.msra.mxu0 0
      %2126 = vmatprep.subr.bf16.mxu0 0
      %2127 = vmatpush2.bf16.msra.mxu0 0
      %2128 = vmatprep.subr.bf16.mxu0 0
      %2129 = vmatpush2.bf16.msra.mxu0 0
      %2130 = vmatprep.subr.bf16.mxu0 0
      %2131 = vmatpush2.bf16.msra.mxu0 0
      %2132 = vmatprep.subr.bf16.mxu0 0
      %2133 = vmatpush2.bf16.msra.mxu0 0
      %2134 = vmatprep.subr.bf16.mxu0 0
      %2135 = vmatpush2.bf16.msra.mxu0 0
      %2136 = vmatprep.subr.bf16.mxu0 0
      %2137 = vmatpush2.bf16.msra.mxu0 0
      %2138 = vmatprep.mubr.bf16.mxu0 0
      %2139 = vmatmul.mubr.bf16.gmra.mxu0 %v1750
      %v2140 = vpop.f32.mrf.mxu0
      %v2141 = vadd.f32 %v1980, %v2140
      %v2142 = vpop.f32.mrf.mxu0
      %v2143 = vpop.f32.mrf.mxu0
      %v2144 = vadd.f32 %v1983, %v2143
      %v2145 = vpop.f32.mrf.mxu0
      %2146 = vmatprep.mubr.bf16.mxu0 0
      %2147 = vmatmul.mubr.bf16.gmra.mxu0 %v1752
      %v2148 = vpop.f32.mrf.mxu0
      %v2149 = vadd.f32 %v1988, %v2148
      %v2150 = vpop.f32.mrf.mxu0
      %v2151 = vpop.f32.mrf.mxu0
      %v2152 = vadd.f32 %v1991, %v2151
      %v2153 = vpop.f32.mrf.mxu0
      %2154 = vmatprep.mubr.bf16.mxu0 0
      %2155 = vmatmul.mubr.bf16.gmra.mxu0 %v1754
      %v2156 = vpop.f32.mrf.mxu0
      %v2157 = vadd.f32 %v1996, %v2156
      %v2158 = vpop.f32.mrf.mxu0
      %v2159 = vpop.f32.mrf.mxu0
      %v2160 = vadd.f32 %v1999, %v2159
      %v2161 = vpop.f32.mrf.mxu0
      %2162 = vmatprep.mubr.bf16.mxu0 0
      %2163 = vmatmul.mubr.bf16.gmra.mxu0 %v1756
      %v2164 = vpop.f32.mrf.mxu0
      %v2165 = vadd.f32 %v2004, %v2164
      %v2166 = vpop.f32.mrf.mxu0
      %v2167 = vpop.f32.mrf.mxu0
      %v2168 = vadd.f32 %v2007, %v2167
      %v2169 = vpop.f32.mrf.mxu0
      %2170 = vmatprep.mubr.bf16.mxu0 0
      %2171 = vmatmul.mubr.bf16.gmra.mxu0 %v1758
      %v2172 = vpop.f32.mrf.mxu0
      %v2173 = vadd.f32 %v2012, %v2172
      %v2174 = vpop.f32.mrf.mxu0
      %v2175 = vpop.f32.mrf.mxu0
      %v2176 = vadd.f32 %v2015, %v2175
      %v2177 = vpop.f32.mrf.mxu0
      %2178 = vmatprep.mubr.bf16.mxu0 0
      %2179 = vmatmul.mubr.bf16.gmra.mxu0 %v1760
      %v2180 = vpop.f32.mrf.mxu0
      %v2181 = vadd.f32 %v2020, %v2180
      %v2182 = vpop.f32.mrf.mxu0
      %v2183 = vpop.f32.mrf.mxu0
      %v2184 = vadd.f32 %v2023, %v2183
      %v2185 = vpop.f32.mrf.mxu0
      %2186 = vmatprep.mubr.bf16.mxu0 0
      %2187 = vmatmul.mubr.bf16.gmra.mxu0 %v1762
      %v2188 = vpop.f32.mrf.mxu0
      %v2189 = vadd.f32 %v2028, %v2188
      %v2190 = vpop.f32.mrf.mxu0
      %v2191 = vpop.f32.mrf.mxu0
      %v2192 = vadd.f32 %v2031, %v2191
      %v2193 = vpop.f32.mrf.mxu0
      %2194 = vmatprep.mubr.bf16.mxu0 0
      %2195 = vmatmul.mubr.bf16.gmra.mxu0 %v1764
      %v2196 = vpop.f32.mrf.mxu0
      %v2197 = vadd.f32 %v2036, %v2196
      %v2198 = vpop.f32.mrf.mxu0
      %v2199 = vpop.f32.mrf.mxu0
      %v2200 = vadd.f32 %v2039, %v2199
      %v2201 = vpop.f32.mrf.mxu0
      %2202 = vmatprep.mubr.bf16.mxu0 0
      %2203 = vmatmul.mubr.bf16.gmra.mxu0 %v1766
      %v2204 = vpop.f32.mrf.mxu0
      %v2205 = vadd.f32 %v2044, %v2204
      %v2206 = vpop.f32.mrf.mxu0
      %v2207 = vpop.f32.mrf.mxu0
      %v2208 = vadd.f32 %v2047, %v2207
      %v2209 = vpop.f32.mrf.mxu0
      %2210 = vmatprep.mubr.bf16.mxu0 0
      %2211 = vmatmul.mubr.bf16.gmra.mxu0 %v1768
      %v2212 = vpop.f32.mrf.mxu0
      %v2213 = vadd.f32 %v2052, %v2212
      %v2214 = vpop.f32.mrf.mxu0
      %v2215 = vpop.f32.mrf.mxu0
      %v2216 = vadd.f32 %v2055, %v2215
      %v2217 = vpop.f32.mrf.mxu0
      %2218 = vmatprep.mubr.bf16.mxu0 0
      %2219 = vmatmul.mubr.bf16.gmra.mxu0 %v1770
      %v2220 = vpop.f32.mrf.mxu0
      %v2221 = vadd.f32 %v2060, %v2220
      %v2222 = vpop.f32.mrf.mxu0
      %v2223 = vpop.f32.mrf.mxu0
      %v2224 = vadd.f32 %v2063, %v2223
      %v2225 = vpop.f32.mrf.mxu0
      %2226 = vmatprep.mubr.bf16.mxu0 0
      %2227 = vmatmul.mubr.bf16.gmra.mxu0 %v1772
      %v2228 = vpop.f32.mrf.mxu0
      %v2229 = vadd.f32 %v2068, %v2228
      %v2230 = vpop.f32.mrf.mxu0
      %v2231 = vpop.f32.mrf.mxu0
      %v2232 = vadd.f32 %v2071, %v2231
      %v2233 = vpop.f32.mrf.mxu0
      %2234 = vmatprep.mubr.bf16.mxu0 0
      %2235 = vmatmul.mubr.bf16.gmra.mxu0 %v1774
      %v2236 = vpop.f32.mrf.mxu0
      %v2237 = vadd.f32 %v2076, %v2236
      %v2238 = vpop.f32.mrf.mxu0
      %v2239 = vpop.f32.mrf.mxu0
      %v2240 = vadd.f32 %v2079, %v2239
      %v2241 = vpop.f32.mrf.mxu0
      %2242 = vmatprep.mubr.bf16.mxu0 0
      %2243 = vmatmul.mubr.bf16.gmra.mxu0 %v1776
      %v2244 = vpop.f32.mrf.mxu0
      %v2245 = vadd.f32 %v2084, %v2244
      %v2246 = vpop.f32.mrf.mxu0
      %v2247 = vpop.f32.mrf.mxu0
      %v2248 = vadd.f32 %v2087, %v2247
      %v2249 = vpop.f32.mrf.mxu0
      %2250 = vmatprep.mubr.bf16.mxu0 0
      %2251 = vmatmul.mubr.bf16.gmra.mxu0 %v1779
      %v2252 = vpop.f32.mrf.mxu0
      %v2253 = vadd.f32 %v2092, %v2252
      %v2254 = vpop.f32.mrf.mxu0
      %v2255 = vpop.f32.mrf.mxu0
      %v2256 = vadd.f32 %v2095, %v2255
      %v2257 = vpop.f32.mrf.mxu0
      %2258 = vmatprep.mubr.bf16.mxu0 0
      %2259 = vmatmul.mubr.bf16.gmra.mxu0 %v1782
      %v2260 = vpop.f32.mrf.mxu0
      %v2261 = vadd.f32 %v2100, %v2260
      %v2262 = vpop.f32.mrf.mxu0
      %v2263 = vpop.f32.mrf.mxu0
      %v2264 = vadd.f32 %v2103, %v2263
      %v2265 = vpop.f32.mrf.mxu0
      %2266 = vdwg.mxu0
      %2267 = vxpose.xlu0.b32.start [1/16] %v2141, 128
      %2268 = vxpose.xlu0.b32.cont [2/16] %v2144, 128
      %2269 = vxpose.xlu0.b32.cont [3/16] %v2149, 128
      %2270 = vxpose.xlu0.b32.cont [4/16] %v2152, 128
      %2271 = vxpose.xlu0.b32.cont [5/16] %v2157, 128
      %2272 = vxpose.xlu0.b32.cont [6/16] %v2160, 128
      %2273 = vxpose.xlu0.b32.cont [7/16] %v2165, 128
      %2274 = vxpose.xlu0.b32.cont [8/16] %v2168, 128
      %2275 = vxpose.xlu0.b32.cont [9/16] %v2173, 128
      %2276 = vxpose.xlu0.b32.cont [10/16] %v2176, 128
      %2277 = vxpose.xlu0.b32.cont [11/16] %v2181, 128
      %2278 = vxpose.xlu0.b32.cont [12/16] %v2184, 128
      %2279 = vxpose.xlu0.b32.cont [13/16] %v2189, 128
      %2280 = vxpose.xlu0.b32.cont [14/16] %v2192, 128
      %2281 = vxpose.xlu0.b32.cont [15/16] %v2197, 128
      %2282 = vxpose.xlu0.b32.end [16/16] %v2200, 128
      %v2283 = vpop.trf.xlu0
      %v2284 = vpop.trf.xlu0
      %v2285 = vpop.trf.xlu0
      %v2286 = vpop.trf.xlu0
      %v2287 = vpop.trf.xlu0
      %v2288 = vpop.trf.xlu0
      %v2289 = vpop.trf.xlu0
      %v2290 = vpop.trf.xlu0
      %v2291 = vpop.trf.xlu0
      %v2292 = vpop.trf.xlu0
      %v2293 = vpop.trf.xlu0
      %v2294 = vpop.trf.xlu0
      %v2295 = vpop.trf.xlu0
      %v2296 = vpop.trf.xlu0
      %v2297 = vpop.trf.xlu0
      %v2298 = vpop.trf.xlu0
      %2299 = vxpose.xlu0.b32.start [1/16] %v2205, 128
      %2300 = vxpose.xlu0.b32.cont [2/16] %v2208, 128
      %2301 = vxpose.xlu0.b32.cont [3/16] %v2213, 128
      %2302 = vxpose.xlu0.b32.cont [4/16] %v2216, 128
      %2303 = vxpose.xlu0.b32.cont [5/16] %v2221, 128
      %2304 = vxpose.xlu0.b32.cont [6/16] %v2224, 128
      %2305 = vxpose.xlu0.b32.cont [7/16] %v2229, 128
      %2306 = vxpose.xlu0.b32.cont [8/16] %v2232, 128
      %2307 = vxpose.xlu0.b32.cont [9/16] %v2237, 128
      %2308 = vxpose.xlu0.b32.cont [10/16] %v2240, 128
      %2309 = vxpose.xlu0.b32.cont [11/16] %v2245, 128
      %2310 = vxpose.xlu0.b32.cont [12/16] %v2248, 128
      %2311 = vxpose.xlu0.b32.cont [13/16] %v2253, 128
      %2312 = vxpose.xlu0.b32.cont [14/16] %v2256, 128
      %2313 = vxpose.xlu0.b32.cont [15/16] %v2261, 128
      %2314 = vxpose.xlu0.b32.end [16/16] %v2264, 128
      %v2315 = vpop.trf.xlu0
      %v2316 = vpop.trf.xlu0
      %v2317 = vpop.trf.xlu0
      %v2318 = vpop.trf.xlu0
      %v2319 = vpop.trf.xlu0
      %v2320 = vpop.trf.xlu0
      %v2321 = vpop.trf.xlu0
      %v2322 = vpop.trf.xlu0
      %v2323 = vpop.trf.xlu0
      %v2324 = vpop.trf.xlu0
      %v2325 = vpop.trf.xlu0
      %v2326 = vpop.trf.xlu0
      %v2327 = vpop.trf.xlu0
      %v2328 = vpop.trf.xlu0
      %v2329 = vpop.trf.xlu0
      %v2330 = vpop.trf.xlu0
      %2331 = vst [vmem:[%s170] sm:$0xff] %v2283
      %2332 = vst [vmem:[%s170 + $0x8] sm:$0xff] %v2315
      %2333 = vst [vmem:[%s170 + $0x10] sm:$0xff] %v2284
      %2334 = vst [vmem:[%s170 + $0x18] sm:$0xff] %v2316
      %p2335 = scmp.lt.s32.totalorder %s14, 1
      %s2336 = scalar_select %p2335, %s14, 1
      %s2337 = smul.addr %s2336, 4
      %s2338 = smul.addr %s2337, 8
      %s2339 = scalar_lea.vmem %s3, %s2338
      // Predicated region
      $region33: #{zero_conv2d.1} parent=31 // pred_check
        %p2340 = pneg %p100
      $region34: #{zero_conv2d.1} parent=31 // pred_check_branch
        %2342 = sbr.rel (%p2340) target = $region36
      $region35: #{zero_conv2d.1} parent=31 // pred_region
        _
      $region36: #{zero_conv2d.1} parent=31 // pred_fallthru
        _
    $region32: #{zero_conv2d.1} parent=5 // pred_fallthru
      _
    %p2343 = scmp.le.s32.totalorder 2, %s9
    // Predicated region
    $region37: #{zero_conv2d.1} parent=5 // pred_check
      %p2344 = pneg %p2343
    $region38: #{zero_conv2d.1} parent=5 // pred_check_branch
      %2346 = sbr.rel (%p2344) target = $region40
    $region39: #{zero_conv2d.1} parent=5 // pred_region
      %s2347 = ssub.s32 %s9, 2
      // Predicated region
      $region41: #{zero_conv2d.1} parent=39 // pred_check
        %p2348 = pneg %p106
      $region42: #{zero_conv2d.1} parent=39 // pred_check_branch
        %2350 = sbr.rel (%p2348) target = $region44
      $region43: #{zero_conv2d.1} parent=39 // pred_region
        %p2351 = scmp.lt.s32.totalorder %s15, 1
        %s2352 = scalar_select %p2351, %s15, 1
        %s2353 = smul.addr %s2352, 4
        %s2354 = smul.addr %s2353, 8
        %s2355 = scalar_lea.vmem %s3, %s2354
      $region44: #{zero_conv2d.1} parent=39 // pred_fallthru
        _
    $region40: #{zero_conv2d.1} parent=5 // pred_fallthru
      _
  $region6: #{zero_conv2d.1} parent=0 // loop_footer
    %s13 = sadd.s32 1, %s9
  $region7: #{zero_conv2d.1} parent=0 // loop_footer_branch
    %8 = sbr.rel target = $region3
  $region8: #{zero_conv2d.1} parent=0 // loop_exit
    _

</llo_original>
